<compile_context>
chip_gen: v5e
topology: v5e:2x2
jax: 0.10.0
libtpu: 0.0.40
codegen_flags: <defaults>
</compile_context>

<pallas_src>
import functools

import jax
import jax.numpy as jnp
import numpy as np
from jax import lax
from jax.experimental import pallas as pl
from jax.experimental.pallas import tpu as pltpu


def _round_up(x, m):
    return ((x + m - 1) // m) * m


def _default_vmem_budget():
    """Generation-aware VMEM budget: ~48 MiB on v7x (64 MiB/TC), ~96 MiB on v5e/v6e."""
    cap = 64 * 1024 * 1024
    try:
        cap = int(getattr(pltpu.get_tpu_info(), "vmem_capacity_bytes", cap))
    except Exception:  # pragma: no cover - query unsupported on this backend
        pass
    return max(32 * 1024 * 1024, min(int(cap * 3 // 4), 100 * 1024 * 1024))


# ----------------------------------------------------------------------------
# Kernel 1: graph_k / hard_knn hot path
# ----------------------------------------------------------------------------
def _graph_knn_kernel(k, valid_cols, tile_n, dist_dtype,
                      xe_ref, ye_ref, y2_ref, score_ref, idx_ref, diff_ref):
    # xe_ref / ye_ref / y2_ref are fully resident; the grid only tiles the
    # query rows / outputs.  Slice the current row tile out of the refs.
    i0 = pl.multiple_of(pl.program_id(0) * tile_n, tile_n)

    xq = xe_ref[pl.ds(i0, tile_n), :]        # (TN, E)  query rows of this tile
    ye = ye_ref[...]                         # (Mp, E)  all candidate rows
    xf = xe_ref[...]                         # (Np, E)  gather source (Np == Mp)
    ye_rows = ye_ref[pl.ds(i0, tile_n), :]   # (TN, E)  rows aligned with queries
    y2 = y2_ref[...]                         # (1, Mp)  hoisted to the wrapper

    mp = ye.shape[0]

    # Squared Euclidean distances via the MXU; ye is consumed in native (Mp, E)
    # layout (transposed-B contraction, no in-kernel transpose).  sqrt/exp are
    # deferred to the K selected minima.
    x2 = jnp.sum(xq * xq, axis=1, keepdims=True)                     # (TN, 1)
    xy = lax.dot_general(xq.astype(dist_dtype), ye.astype(dist_dtype),
                         dimension_numbers=(((1,), (1,)), ((), ())),
                         preferred_element_type=jnp.float32)         # (TN, Mp)
    d2 = x2 + y2 - 2.0 * xy

    # (1, Mp) iota: broadcasts for free in the VPU compares, tile_n x less VMEM.
    col = lax.broadcasted_iota(jnp.int32, (1, mp), 1)
    if valid_cols != mp:                      # static: mask padded candidate cols
        d2 = jnp.where(col < valid_cols, d2, jnp.inf)

    work = d2
    d2_mins, idxs, sels = [], [], []
    # TODO(synk): if the bundle dump shows XLU (not MXU) saturating for large K,
    # fuse the value+index reductions below into one combined-key reduce.
    for _ in range(k):   # k is small & static -> unrolled iterative arg-min
        minval = jnp.min(work, axis=1, keepdims=True)                   # (TN, 1)
        hit = work == minval
        idx = jnp.min(jnp.where(hit, col, mp), axis=1, keepdims=True)   # tie-break: min col
        sel = col == idx          # single compare reused for invalidation + gather
        work = jnp.where(sel, jnp.inf, work)
        d2_mins.append(minval)
        idxs.append(idx)
        sels.append(sel)

    # Row gather of xe at all K indices via ONE tile-bounded (K*TN, Mp) one-hot
    # matmul (exact: one-hot entries are 0/1; kept in f32 so diff stays exact).
    # The xe RHS is pushed to the MXU once instead of K times.
    # TODO(synk): switch to a direct dynamic row gather once a robust Mosaic
    # row-gather lowering is available.
    sel_all = jnp.concatenate(sels, axis=0).astype(jnp.float32)         # (K*TN, Mp)
    gathered = jnp.dot(sel_all, xf, preferred_element_type=jnp.float32)  # (K*TN, E)
    for kk in range(k):
        diff_ref[kk] = ye_rows - gathered[kk * tile_n:(kk + 1) * tile_n, :]

    # sqrt / exp only on the selected (TN, K) minima, not the full (TN, Mp) matrix.
    d2k = jnp.maximum(jnp.concatenate(d2_mins, axis=1), 0.0)            # (TN, K)
    score_ref[...] = jnp.exp(-jnp.sqrt(d2k) / 10.0)
    # TODO(synk): torch.topk returns int64 indices; int32 is used on TPU.
    idx_ref[...] = jnp.concatenate(idxs, axis=1).astype(jnp.int32)


def _graph_vmem_estimate(tile_n, np_, e, k, resident_bufs):
    resident = resident_bufs * (2 * np_ * e + np_) * 4     # xe, ye, y2
    work = (3 + k) * tile_n * np_ * 4                      # d2/work/sel + one-hot concat
    gathered = k * tile_n * e * 4
    outs = 2 * (2 * tile_n * k * 4 + k * tile_n * e * 4)   # double-buffered outputs
    return resident + work + gathered + outs + (2 << 20)   # + headroom


def graph_construct_k(xe, ye, k=1, tile_n=256, diff_layout="mek",
                      dist_dtype=jnp.float32, vmem_budget_bytes=None):
    """Pallas equivalent of GraphConstruct_TransformerST.graph_k.

    xe: (1, n, e), ye: (1, m, e) with n == m (as assumed by the PyTorch code).
    Returns (score_k (1,m,k), idx_k (1,m,k) int32, diff_patch):
      diff_layout="mek" (default): diff_patch is PyTorch's (1, m, e, k)
      diff_layout="kme"          : diff_patch is (1, k, m, e) — the kernel's
                                   lane-dense layout, no extra HBM transpose pass.
    dist_dtype=jnp.bfloat16 gives ~3x MXU throughput on the distance matmul at
    the cost of possible near-tie neighbour flips (default keeps f32).
    """
    assert xe.shape[0] == 1 and ye.shape[0] == 1
    _, n, e = xe.shape
    _, m, _ = ye.shape
    assert n == m, "PyTorch reference assumes n == m (D is (n, n))"
    assert 1 <= k <= m

    if vmem_budget_bytes is None:
        vmem_budget_bytes = _default_vmem_budget()

    xe2 = xe[0].astype(jnp.float32)
    ye2 = ye[0].astype(jnp.float32)

    # Row tile: multiple of 8 (sublane), sized against the per-generation budget
    # assuming single-buffered resident inputs.
    tile_n = max(8, min((tile_n // 8) * 8, _round_up(n, 8)))
    while (tile_n > 8 and
           _graph_vmem_estimate(tile_n, _round_up(n, tile_n), e, k, 1)
           > vmem_budget_bytes):
        tile_n = max(8, (tile_n // 2 // 8) * 8)
    # TODO(synk): add a streaming-candidate (column-tiled, running top-k) path
    # for v7x when 2*N*E*4B still exceeds the per-TC budget at tile_n == 8.

    np_ = _round_up(n, tile_n)
    if np_ != n:
        pad = np_ - n
        xe2 = jnp.pad(xe2, ((0, pad), (0, 0)))
        ye2 = jnp.pad(ye2, ((0, pad), (0, 0)))

    # y^2 hoisted out of the kernel (was recomputed over the whole candidate set
    # on every row tile); padded rows are handled by the valid-column mask.
    y2 = jnp.sum(ye2 * ye2, axis=1, keepdims=True).T            # (1, Np)

    def run(single_buffer):
        if single_buffer:
            # Constant index_map -> double-buffering only wastes VMEM.
            def res_spec(shape):
                return pl.BlockSpec(shape, lambda i: (0,) * len(shape),
                                    pipeline_mode=pl.Buffered(1))
        else:
            def res_spec(shape):
                return pl.BlockSpec(shape, lambda i: (0,) * len(shape))
        return pl.pallas_call(
            functools.partial(_graph_knn_kernel, k, m, tile_n, dist_dtype),
            out_shape=(
                jax.ShapeDtypeStruct((np_, k), jnp.float32),
                jax.ShapeDtypeStruct((np_, k), jnp.int32),
                jax.ShapeDtypeStruct((k, np_, e), jnp.float32),
            ),
            grid=(np_ // tile_n,),
            in_specs=[res_spec((np_, e)), res_spec((np_, e)), res_spec((1, np_))],
            out_specs=(
                pl.BlockSpec((tile_n, k), lambda i: (i, 0)),
                pl.BlockSpec((tile_n, k), lambda i: (i, 0)),
                pl.BlockSpec((k, tile_n, e), lambda i: (0, i, 0)),
            ),
            compiler_params=pltpu.CompilerParams(
                dimension_semantics=("parallel",),   # megacore: rows split across TCs
                vmem_limit_bytes=vmem_budget_bytes,
            ),
        )(xe2, ye2, y2)

    try:
        score, idx, diff = run(single_buffer=True)
    except Exception:
        # Fallback for environments where pipeline_mode / Buffered(1) is not
        # supported by the installed Pallas version.
        score, idx, diff = run(single_buffer=False)

    score_k = score[:n][None]                    # (1, m, k)
    idx_k = idx[:n][None]                        # (1, m, k)
    diff = diff[:, :n, :]                        # (k, m, e)
    if diff_layout == "kme":
        diff_patch = diff[None]                  # (1, k, m, e)
    else:
        diff_patch = jnp.transpose(diff, (1, 2, 0))[None]   # PyTorch (1, m, e, k)
    return score_k, idx_k, diff_patch


# ----------------------------------------------------------------------------
# Kernel 2: forward()'s dense pairwise distance matrix `dis`
# ----------------------------------------------------------------------------
def _pairwise_dist_kernel(a_ref, bt_ref, out_ref):
    a = a_ref[...]        # (TS, D) tile of super-pixel coords
    bt = bt_ref[...]      # (D, TR) tile of raw spot coords, pre-transposed
    acc = jnp.zeros((a.shape[0], bt.shape[1]), jnp.float32)
    for j in range(a.shape[1]):    # static, D == 3
        delta = a[:, j:j + 1] - bt[j:j + 1, :]    # (TS, TR)
        acc = acc + delta * delta
    out_ref[...] = jnp.sqrt(acc)


def pairwise_dist(super_coords, raw_coords, tile_s=512, tile_r=1024):
    """dis[i, j] = ||super_coords[i] - raw_coords[j]||_2  (forward()'s hot path)."""
    s, d = super_coords.shape
    r, d2 = raw_coords.shape
    assert d == d2

    a = super_coords.astype(jnp.float32)
    bt = raw_coords.astype(jnp.float32).T        # (D, R); cheap glue transpose

    # Lane/sublane-aligned tiles, clamped to the (padded) problem size.
    tile_s = max(8, min((tile_s // 8) * 8, _round_up(s, 8)))
    tile_r = max(128, min((tile_r // 128) * 128, _round_up(r, 128)))
    sp = _round_up(s, tile_s)
    rp = _round_up(r, tile_r)
    if sp != s:
        a = jnp.pad(a, ((0, sp - s), (0, 0)))
    if rp != r:
        bt = jnp.pad(bt, ((0, 0), (0, rp - r)))

    out = pl.pallas_call(
        _pairwise_dist_kernel,
        out_shape=jax.ShapeDtypeStruct((sp, rp), jnp.float32),
        grid=(sp // tile_s, rp // tile_r),
        in_specs=[
            pl.BlockSpec((tile_s, d), lambda i, j: (i, 0)),
            pl.BlockSpec((d, tile_r), lambda i, j: (0, j)),
        ],
        out_specs=pl.BlockSpec((tile_s, tile_r), lambda i, j: (i, j)),
        compiler_params=pltpu.CompilerParams(
            dimension_semantics=("parallel", "parallel"),
            vmem_limit_bytes=_default_vmem_budget(),
        ),
    )(a, bt)
    return out[:s, :r]


# ----------------------------------------------------------------------------
# Self-test vs float64 numpy references
# ----------------------------------------------------------------------------
if __name__ == "__main__":
    key = jax.random.PRNGKey(0)
    k1, k2, k3, k4 = jax.random.split(key, 4)

    # graph_k inputs: batch=1, n=m=120 nodes, e=32 features, k=2 neighbours.
    # tile_n=32 forces a 4-step (padded 120->128) grid so the tiled path runs
    # even at this small size.
    b, n, e, k = 1, 120, 32, 2
    xe = jax.random.normal(k1, (b, n, e), jnp.float32)
    ye = jax.random.normal(k2, (b, n, e), jnp.float32)
    score_k, idx_k, diff_patch = graph_construct_k(xe, ye, k=k, tile_n=32)

    # forward() `dis` inputs: 50 super-pixel coords x 200 raw spots, 3-D coords.
    # Small explicit tiles exercise the 2-D grid + padding path.
    sup = jax.random.normal(k3, (50, 3), jnp.float32) * 10.0
    raw = jax.random.normal(k4, (200, 3), jnp.float32) * 10.0
    dis = pairwise_dist(sup, raw, tile_s=16, tile_r=128)

    jax.block_until_ready((score_k, idx_k, diff_patch, dis))

    # ---- graph_k checks -----------------------------------------------------
    xe0 = np.asarray(xe[0], np.float64)
    ye0 = np.asarray(ye[0], np.float64)
    D = np.sqrt(((xe0[:, None, :] - ye0[None, :, :]) ** 2).sum(-1))     # (n, n)
    d_opt = np.sort(D, axis=1)[:, :k]
    # scores match the k smallest sorted distances (robust to near-ties)
    assert np.allclose(np.asarray(score_k)[0], np.exp(-d_opt / 10.0),
                       atol=1e-4, rtol=1e-4)
    # selected neighbours are (within fp tolerance) the true k nearest
    idx0 = np.asarray(idx_k)[0].astype(np.int64)
    d_sel = np.take_along_axis(D, idx0, axis=1)
    assert np.allclose(d_sel, d_opt, atol=1e-4, rtol=1e-4)
    # diff_patch matches PyTorch's gather semantics for the emitted indices
    diff_expected = ye0[:, :, None] - np.transpose(xe0[idx0], (0, 2, 1))  # (n, e, k)
    assert np.allclose(np.asarray(diff_patch)[0], diff_expected,
                       atol=1e-4, rtol=1e-4)

    # ---- pairwise_dist check ------------------------------------------------
    dis_ref = np.sqrt(((np.asarray(sup, np.float64)[:, None, :]
                        - np.asarray(raw, np.float64)[None, :, :]) ** 2).sum(-1))
    assert np.allclose(np.asarray(dis), dis_ref, atol=1e-3, rtol=1e-4)

    print("KERNEL_OK")
</pallas_src>

<mosaic_0001>
module attributes {stable_mosaic.version = 11 : i64} {
  func.func @_graph_knn_kernel(%arg0: i32, %arg1: memref<128x32xf32, #tpu.memory_space<vmem>>, %arg2: memref<128x32xf32, #tpu.memory_space<vmem>>, %arg3: memref<1x128xf32, #tpu.memory_space<vmem>>, %arg4: memref<32x2xf32, #tpu.memory_space<vmem>>, %arg5: memref<32x2xi32, #tpu.memory_space<vmem>>, %arg6: memref<2x32x32xf32, #tpu.memory_space<vmem>>) attributes {dimension_semantics = [#tpu.dimension_semantics<parallel>], iteration_bounds = array<i64: 4>, scalar_prefetch = 0 : i64, scratch_operands = 0 : i64, tpu.core_type = #tpu.core_type<tc>, window_params = [{pipeline_mode = #tpu.pipeline_mode<synchronous>, transform_indices = @transform_0, window_bounds = array<i64: 128, 32>}, {pipeline_mode = #tpu.pipeline_mode<synchronous>, transform_indices = @transform_1, window_bounds = array<i64: 128, 32>}, {pipeline_mode = #tpu.pipeline_mode<synchronous>, transform_indices = @transform_2, window_bounds = array<i64: 1, 128>}, {transform_indices = @transform_3, window_bounds = array<i64: 32, 2>}, {transform_indices = @transform_4, window_bounds = array<i64: 32, 2>}, {transform_indices = @transform_5, window_bounds = array<i64: 2, 32, 32>}]} {
    %c32_i32 = arith.constant 32 : i32
    %0 = arith.muli %arg0, %c32_i32 : i32
    %1 = tpu.assume_multiple %0, 32 : i32
    %2 = arith.index_cast %1 : i32 to index
    %c0 = arith.constant 0 : index
    %3 = vector.load %arg1[%2, %c0] : memref<128x32xf32, #tpu.memory_space<vmem>>, vector<32x32xf32>
    %c0_0 = arith.constant 0 : index
    %c0_1 = arith.constant 0 : index
    %4 = vector.load %arg2[%c0_0, %c0_1] : memref<128x32xf32, #tpu.memory_space<vmem>>, vector<128x32xf32>
    %c0_2 = arith.constant 0 : index
    %c0_3 = arith.constant 0 : index
    %5 = vector.load %arg1[%c0_2, %c0_3] : memref<128x32xf32, #tpu.memory_space<vmem>>, vector<128x32xf32>
    %6 = arith.index_cast %1 : i32 to index
    %c0_4 = arith.constant 0 : index
    %7 = vector.load %arg2[%6, %c0_4] : memref<128x32xf32, #tpu.memory_space<vmem>>, vector<32x32xf32>
    %c0_5 = arith.constant 0 : index
    %c0_6 = arith.constant 0 : index
    %8 = vector.load %arg3[%c0_5, %c0_6] : memref<1x128xf32, #tpu.memory_space<vmem>>, vector<1x128xf32>
    %9 = arith.mulf %3, %3 : vector<32x32xf32>
    %cst = arith.constant dense<0.000000e+00> : vector<32xf32>
    %10 = vector.multi_reduction <add>, %9, %cst [1] : vector<32x32xf32> to vector<32xf32>
    %11 = vector.shape_cast %10 : vector<32xf32> to vector<32x1xf32>
    %cst_7 = arith.constant dense<0.000000e+00> : vector<32x128xf32>
    %12 = tpu.matmul %3, %4, %cst_7 {dimension_numbers = #tpu.dot_dimension_numbers<[1], [1], [0], [0], [0, 0, 1, 0], [], []>} : vector<32x32xf32>, vector<128x32xf32>, vector<32x128xf32> -> vector<32x128xf32>
    %13 = vector.broadcast %11 : vector<32x1xf32> to vector<32x128xf32>
    %14 = vector.broadcast %8 : vector<1x128xf32> to vector<32x128xf32>
    %15 = arith.addf %13, %14 : vector<32x128xf32>
    %cst_8 = arith.constant 2.000000e+00 : f32
    %16 = vector.broadcast %cst_8 : f32 to vector<32x128xf32>
    %17 = arith.mulf %16, %12 : vector<32x128xf32>
    %18 = arith.subf %15, %17 : vector<32x128xf32>
    %19 = tpu.iota {dimensions = array<i32: 1>} : vector<1x128xi32>
    %c120_i32 = arith.constant 120 : i32
    %20 = vector.broadcast %c120_i32 : i32 to vector<1x128xi32>
    %21 = arith.cmpi slt, %19, %20 : vector<1x128xi32>
    %cst_9 = arith.constant 0x7F800000 : f32
    %22 = vector.shape_cast %21 : vector<1x128xi1> to vector<1x128xi1>
    %23 = vector.broadcast %22 : vector<1x128xi1> to vector<32x128xi1>
    %24 = vector.broadcast %cst_9 : f32 to vector<32x128xf32>
    %25 = arith.select %23, %18, %24 : vector<32x128xi1>, vector<32x128xf32>
    %cst_10 = arith.constant dense<0x7F800000> : vector<32xf32>
    %26 = vector.multi_reduction <minimumf>, %25, %cst_10 [1] : vector<32x128xf32> to vector<32xf32>
    %27 = vector.shape_cast %26 : vector<32xf32> to vector<32x1xf32>
    %28 = vector.broadcast %27 : vector<32x1xf32> to vector<32x128xf32>
    %29 = arith.cmpf oeq, %25, %28 : vector<32x128xf32>
    %c128_i32 = arith.constant 128 : i32
    %30 = vector.shape_cast %19 : vector<1x128xi32> to vector<1x128xi32>
    %31 = vector.broadcast %30 : vector<1x128xi32> to vector<32x128xi32>
    %32 = vector.broadcast %c128_i32 : i32 to vector<32x128xi32>
    %33 = arith.select %29, %31, %32 : vector<32x128xi1>, vector<32x128xi32>
    %cst_11 = arith.constant dense<2147483647> : vector<32xi32>
    %34 = vector.multi_reduction <minsi>, %33, %cst_11 [1] : vector<32x128xi32> to vector<32xi32>
    %35 = vector.shape_cast %34 : vector<32xi32> to vector<32x1xi32>
    %36 = vector.broadcast %19 : vector<1x128xi32> to vector<32x128xi32>
    %37 = vector.broadcast %35 : vector<32x1xi32> to vector<32x128xi32>
    %38 = arith.cmpi eq, %36, %37 : vector<32x128xi32>
    %cst_12 = arith.constant 0x7F800000 : f32
    %39 = vector.broadcast %cst_12 : f32 to vector<32x128xf32>
    %40 = arith.select %38, %39, %25 : vector<32x128xi1>, vector<32x128xf32>
    %cst_13 = arith.constant dense<0x7F800000> : vector<32xf32>
    %41 = vector.multi_reduction <minimumf>, %40, %cst_13 [1] : vector<32x128xf32> to vector<32xf32>
    %42 = vector.shape_cast %41 : vector<32xf32> to vector<32x1xf32>
    %43 = vector.broadcast %42 : vector<32x1xf32> to vector<32x128xf32>
    %44 = arith.cmpf oeq, %40, %43 : vector<32x128xf32>
    %c128_i32_14 = arith.constant 128 : i32
    %45 = vector.shape_cast %19 : vector<1x128xi32> to vector<1x128xi32>
    %46 = vector.broadcast %45 : vector<1x128xi32> to vector<32x128xi32>
    %47 = vector.broadcast %c128_i32_14 : i32 to vector<32x128xi32>
    %48 = arith.select %44, %46, %47 : vector<32x128xi1>, vector<32x128xi32>
    %cst_15 = arith.constant dense<2147483647> : vector<32xi32>
    %49 = vector.multi_reduction <minsi>, %48, %cst_15 [1] : vector<32x128xi32> to vector<32xi32>
    %50 = vector.shape_cast %49 : vector<32xi32> to vector<32x1xi32>
    %51 = vector.broadcast %19 : vector<1x128xi32> to vector<32x128xi32>
    %52 = vector.broadcast %50 : vector<32x1xi32> to vector<32x128xi32>
    %53 = arith.cmpi eq, %51, %52 : vector<32x128xi32>
    %54 = tpu.concatenate %38, %53 in 0 : vector<32x128xi1>, vector<32x128xi1> -> vector<64x128xi1>
    %55 = arith.extui %54 : vector<64x128xi1> to vector<64x128xi32>
    %56 = arith.sitofp %55 : vector<64x128xi32> to vector<64x128xf32>
    %cst_16 = arith.constant dense<0.000000e+00> : vector<64x32xf32>
    %57 = tpu.matmul %56, %5, %cst_16 {dimension_numbers = #tpu.dot_dimension_numbers<[1], [0], [0], [1], [0, 0, 1, 1], [], []>} : vector<64x128xf32>, vector<128x32xf32>, vector<64x32xf32> -> vector<64x32xf32>
    %58 = vector.extract_strided_slice %57 {offsets = [0, 0], sizes = [32, 32], strides = [1, 1]} : vector<64x32xf32> to vector<32x32xf32>
    %59 = arith.subf %7, %58 : vector<32x32xf32>
    %c0_17 = arith.constant 0 : index
    %c0_18 = arith.constant 0 : index
    %c0_19 = arith.constant 0 : index
    %60 = vector.load %arg6[%c0_17, %c0_18, %c0_19] : memref<2x32x32xf32, #tpu.memory_space<vmem>>, vector<1x32x32xf32>
    %61 = vector.shape_cast %60 : vector<1x32x32xf32> to vector<32x32xf32>
    %62 = vector.shape_cast %59 : vector<32x32xf32> to vector<1x32x32xf32>
    tpu.vector_store %arg6[%c0_17, %c0_18, %c0_19], %62 {strides = array<i32>} : memref<2x32x32xf32, #tpu.memory_space<vmem>>, vector<1x32x32xf32>,
    %63 = vector.extract_strided_slice %57 {offsets = [32, 0], sizes = [32, 32], strides = [1, 1]} : vector<64x32xf32> to vector<32x32xf32>
    %64 = arith.subf %7, %63 : vector<32x32xf32>
    %c1 = arith.constant 1 : index
    %c0_20 = arith.constant 0 : index
    %c0_21 = arith.constant 0 : index
    %65 = vector.load %arg6[%c1, %c0_20, %c0_21] : memref<2x32x32xf32, #tpu.memory_space<vmem>>, vector<1x32x32xf32>
    %66 = vector.shape_cast %65 : vector<1x32x32xf32> to vector<32x32xf32>
    %67 = vector.shape_cast %64 : vector<32x32xf32> to vector<1x32x32xf32>
    tpu.vector_store %arg6[%c1, %c0_20, %c0_21], %67 {strides = array<i32>} : memref<2x32x32xf32, #tpu.memory_space<vmem>>, vector<1x32x32xf32>,
    %68 = tpu.concatenate %27, %42 in 1 : vector<32x1xf32>, vector<32x1xf32> -> vector<32x2xf32>
    %cst_22 = arith.constant 0.000000e+00 : f32
    %69 = vector.broadcast %cst_22 : f32 to vector<32x2xf32>
    %70 = arith.maximumf %68, %69 : vector<32x2xf32>
    %71 = math.sqrt %70 : vector<32x2xf32>
    %cst_23 = arith.constant 0.000000e+00 : f32
    %72 = vector.broadcast %cst_23 : f32 to vector<32x2xf32>
    %73 = arith.subf %72, %71 : vector<32x2xf32>
    %cst_24 = arith.constant 1.000000e+01 : f32
    %74 = vector.broadcast %cst_24 : f32 to vector<32x2xf32>
    %75 = arith.divf %73, %74 : vector<32x2xf32>
    %76 = math.exp %75 : vector<32x2xf32>
    %c0_25 = arith.constant 0 : index
    %c0_26 = arith.constant 0 : index
    %77 = vector.load %arg4[%c0_25, %c0_26] : memref<32x2xf32, #tpu.memory_space<vmem>>, vector<32x2xf32>
    tpu.vector_store %arg4[%c0_25, %c0_26], %76 {strides = array<i32>} : memref<32x2xf32, #tpu.memory_space<vmem>>, vector<32x2xf32>,
    %78 = tpu.concatenate %35, %50 in 1 : vector<32x1xi32>, vector<32x1xi32> -> vector<32x2xi32>
    %c0_27 = arith.constant 0 : index
    %c0_28 = arith.constant 0 : index
    %79 = vector.load %arg5[%c0_27, %c0_28] : memref<32x2xi32, #tpu.memory_space<vmem>>, vector<32x2xi32>
    tpu.vector_store %arg5[%c0_27, %c0_28], %78 {strides = array<i32>} : memref<32x2xi32, #tpu.memory_space<vmem>>, vector<32x2xi32>,
    return
  }
  func.func @transform_0(%arg0: i32) -> (i32, i32) {
    %c0_i32 = arith.constant 0 : i32
    %c0_i32_0 = arith.constant 0 : i32
    %c0_i32_1 = arith.constant 0 : i32
    return %c0_i32, %c0_i32_0 : i32, i32
  }
  func.func @transform_1(%arg0: i32) -> (i32, i32) {
    %c0_i32 = arith.constant 0 : i32
    %c0_i32_0 = arith.constant 0 : i32
    %c0_i32_1 = arith.constant 0 : i32
    return %c0_i32, %c0_i32_0 : i32, i32
  }
  func.func @transform_2(%arg0: i32) -> (i32, i32) {
    %c0_i32 = arith.constant 0 : i32
    %c0_i32_0 = arith.constant 0 : i32
    %c0_i32_1 = arith.constant 0 : i32
    return %c0_i32, %c0_i32_0 : i32, i32
  }
  func.func @transform_3(%arg0: i32) -> (i32, i32) {
    %c0_i32 = arith.constant 0 : i32
    %c0_i32_0 = arith.constant 0 : i32
    return %arg0, %c0_i32 : i32, i32
  }
  func.func @transform_4(%arg0: i32) -> (i32, i32) {
    %c0_i32 = arith.constant 0 : i32
    %c0_i32_0 = arith.constant 0 : i32
    return %arg0, %c0_i32 : i32, i32
  }
  func.func @transform_5(%arg0: i32) -> (i32, i32, i32) {
    %c0_i32 = arith.constant 0 : i32
    %c0_i32_0 = arith.constant 0 : i32
    %c0_i32_1 = arith.constant 0 : i32
    return %c0_i32, %arg0, %c0_i32_0 : i32, i32, i32
  }
}

module attributes {stable_mosaic.version = 11 : i64} {
  func.func @_graph_knn_kernel(%arg0: i32, %arg1: memref<128x32xf32, #tpu.memory_space<vmem>>, %arg2: memref<128x32xf32, #tpu.memory_space<vmem>>, %arg3: memref<1x128xf32, #tpu.memory_space<vmem>>, %arg4: memref<32x2xf32, #tpu.memory_space<vmem>>, %arg5: memref<32x2xi32, #tpu.memory_space<vmem>>, %arg6: memref<2x32x32xf32, #tpu.memory_space<vmem>>) attributes {dimension_semantics = [#tpu.dimension_semantics<parallel>], iteration_bounds = array<i64: 4>, scalar_prefetch = 0 : i64, scratch_operands = 0 : i64, tpu.core_type = #tpu.core_type<tc>, window_params = [{pipeline_mode = #tpu.pipeline_mode<synchronous>, transform_indices = @transform_0, window_bounds = array<i64: 128, 32>}, {pipeline_mode = #tpu.pipeline_mode<synchronous>, transform_indices = @transform_1, window_bounds = array<i64: 128, 32>}, {pipeline_mode = #tpu.pipeline_mode<synchronous>, transform_indices = @transform_2, window_bounds = array<i64: 1, 128>}, {transform_indices = @transform_3, window_bounds = array<i64: 32, 2>}, {transform_indices = @transform_4, window_bounds = array<i64: 32, 2>}, {transform_indices = @transform_5, window_bounds = array<i64: 2, 32, 32>}]} {
    %c32_i32 = arith.constant 32 : i32
    %0 = arith.muli %arg0, %c32_i32 : i32
    %1 = tpu.assume_multiple %0, 32 : i32
    %2 = arith.index_cast %1 : i32 to index
    %c0 = arith.constant 0 : index
    %3 = vector.load %arg1[%2, %c0] : memref<128x32xf32, #tpu.memory_space<vmem>>, vector<32x32xf32>
    %c0_0 = arith.constant 0 : index
    %c0_1 = arith.constant 0 : index
    %4 = vector.load %arg2[%c0_0, %c0_1] : memref<128x32xf32, #tpu.memory_space<vmem>>, vector<128x32xf32>
    %c0_2 = arith.constant 0 : index
    %c0_3 = arith.constant 0 : index
    %5 = vector.load %arg1[%c0_2, %c0_3] : memref<128x32xf32, #tpu.memory_space<vmem>>, vector<128x32xf32>
    %6 = arith.index_cast %1 : i32 to index
    %c0_4 = arith.constant 0 : index
    %7 = vector.load %arg2[%6, %c0_4] : memref<128x32xf32, #tpu.memory_space<vmem>>, vector<32x32xf32>
    %c0_5 = arith.constant 0 : index
    %c0_6 = arith.constant 0 : index
    %8 = vector.load %arg3[%c0_5, %c0_6] : memref<1x128xf32, #tpu.memory_space<vmem>>, vector<1x128xf32>
    %9 = arith.mulf %3, %3 : vector<32x32xf32>
    %cst = arith.constant dense<0.000000e+00> : vector<32xf32>
    %10 = vector.multi_reduction <add>, %9, %cst [1] : vector<32x32xf32> to vector<32xf32>
    %11 = vector.shape_cast %10 : vector<32xf32> to vector<32x1xf32>
    %cst_7 = arith.constant dense<0.000000e+00> : vector<32x128xf32>
    %12 = tpu.matmul %3, %4, %cst_7 {dimension_numbers = #tpu.dot_dimension_numbers<[1], [1], [0], [0], [0, 0, 1, 0], [], []>} : vector<32x32xf32>, vector<128x32xf32>, vector<32x128xf32> -> vector<32x128xf32>
    %13 = vector.broadcast %11 : vector<32x1xf32> to vector<32x128xf32>
    %14 = vector.broadcast %8 : vector<1x128xf32> to vector<32x128xf32>
    %15 = arith.addf %13, %14 : vector<32x128xf32>
    %cst_8 = arith.constant 2.000000e+00 : f32
    %16 = vector.broadcast %cst_8 : f32 to vector<32x128xf32>
    %17 = arith.mulf %16, %12 : vector<32x128xf32>
    %18 = arith.subf %15, %17 : vector<32x128xf32>
    %19 = tpu.iota {dimensions = array<i32: 1>} : vector<1x128xi32>
    %c120_i32 = arith.constant 120 : i32
    %20 = vector.broadcast %c120_i32 : i32 to vector<1x128xi32>
    %21 = arith.cmpi slt, %19, %20 : vector<1x128xi32>
    %cst_9 = arith.constant 0x7F800000 : f32
    %22 = vector.shape_cast %21 : vector<1x128xi1> to vector<1x128xi1>
    %23 = vector.broadcast %22 : vector<1x128xi1> to vector<32x128xi1>
    %24 = vector.broadcast %cst_9 : f32 to vector<32x128xf32>
    %25 = arith.select %23, %18, %24 : vector<32x128xi1>, vector<32x128xf32>
    %cst_10 = arith.constant dense<0x7F800000> : vector<32xf32>
    %26 = vector.multi_reduction <minimumf>, %25, %cst_10 [1] : vector<32x128xf32> to vector<32xf32>
    %27 = vector.shape_cast %26 : vector<32xf32> to vector<32x1xf32>
    %28 = vector.broadcast %27 : vector<32x1xf32> to vector<32x128xf32>
    %29 = arith.cmpf oeq, %25, %28 : vector<32x128xf32>
    %c128_i32 = arith.constant 128 : i32
    %30 = vector.shape_cast %19 : vector<1x128xi32> to vector<1x128xi32>
    %31 = vector.broadcast %30 : vector<1x128xi32> to vector<32x128xi32>
    %32 = vector.broadcast %c128_i32 : i32 to vector<32x128xi32>
    %33 = arith.select %29, %31, %32 : vector<32x128xi1>, vector<32x128xi32>
    %cst_11 = arith.constant dense<2147483647> : vector<32xi32>
    %34 = vector.multi_reduction <minsi>, %33, %cst_11 [1] : vector<32x128xi32> to vector<32xi32>
    %35 = vector.shape_cast %34 : vector<32xi32> to vector<32x1xi32>
    %36 = vector.broadcast %19 : vector<1x128xi32> to vector<32x128xi32>
    %37 = vector.broadcast %35 : vector<32x1xi32> to vector<32x128xi32>
    %38 = arith.cmpi eq, %36, %37 : vector<32x128xi32>
    %cst_12 = arith.constant 0x7F800000 : f32
    %39 = vector.broadcast %cst_12 : f32 to vector<32x128xf32>
    %40 = arith.select %38, %39, %25 : vector<32x128xi1>, vector<32x128xf32>
    %cst_13 = arith.constant dense<0x7F800000> : vector<32xf32>
    %41 = vector.multi_reduction <minimumf>, %40, %cst_13 [1] : vector<32x128xf32> to vector<32xf32>
    %42 = vector.shape_cast %41 : vector<32xf32> to vector<32x1xf32>
    %43 = vector.broadcast %42 : vector<32x1xf32> to vector<32x128xf32>
    %44 = arith.cmpf oeq, %40, %43 : vector<32x128xf32>
    %c128_i32_14 = arith.constant 128 : i32
    %45 = vector.shape_cast %19 : vector<1x128xi32> to vector<1x128xi32>
    %46 = vector.broadcast %45 : vector<1x128xi32> to vector<32x128xi32>
    %47 = vector.broadcast %c128_i32_14 : i32 to vector<32x128xi32>
    %48 = arith.select %44, %46, %47 : vector<32x128xi1>, vector<32x128xi32>
    %cst_15 = arith.constant dense<2147483647> : vector<32xi32>
    %49 = vector.multi_reduction <minsi>, %48, %cst_15 [1] : vector<32x128xi32> to vector<32xi32>
    %50 = vector.shape_cast %49 : vector<32xi32> to vector<32x1xi32>
    %51 = vector.broadcast %19 : vector<1x128xi32> to vector<32x128xi32>
    %52 = vector.broadcast %50 : vector<32x1xi32> to vector<32x128xi32>
    %53 = arith.cmpi eq, %51, %52 : vector<32x128xi32>
    %54 = tpu.concatenate %38, %53 in 0 : vector<32x128xi1>, vector<32x128xi1> -> vector<64x128xi1>
    %55 = arith.extui %54 : vector<64x128xi1> to vector<64x128xi32>
    %56 = arith.sitofp %55 : vector<64x128xi32> to vector<64x128xf32>
    %cst_16 = arith.constant dense<0.000000e+00> : vector<64x32xf32>
    %57 = tpu.matmul %56, %5, %cst_16 {dimension_numbers = #tpu.dot_dimension_numbers<[1], [0], [0], [1], [0, 0, 1, 1], [], []>} : vector<64x128xf32>, vector<128x32xf32>, vector<64x32xf32> -> vector<64x32xf32>
    %58 = vector.extract_strided_slice %57 {offsets = [0, 0], sizes = [32, 32], strides = [1, 1]} : vector<64x32xf32> to vector<32x32xf32>
    %59 = arith.subf %7, %58 : vector<32x32xf32>
    %c0_17 = arith.constant 0 : index
    %c0_18 = arith.constant 0 : index
    %c0_19 = arith.constant 0 : index
    %60 = vector.load %arg6[%c0_17, %c0_18, %c0_19] : memref<2x32x32xf32, #tpu.memory_space<vmem>>, vector<1x32x32xf32>
    %61 = vector.shape_cast %60 : vector<1x32x32xf32> to vector<32x32xf32>
    %62 = vector.shape_cast %59 : vector<32x32xf32> to vector<1x32x32xf32>
    tpu.vector_store %arg6[%c0_17, %c0_18, %c0_19], %62 {strides = array<i32>} : memref<2x32x32xf32, #tpu.memory_space<vmem>>, vector<1x32x32xf32>,
    %63 = vector.extract_strided_slice %57 {offsets = [32, 0], sizes = [32, 32], strides = [1, 1]} : vector<64x32xf32> to vector<32x32xf32>
    %64 = arith.subf %7, %63 : vector<32x32xf32>
    %c1 = arith.constant 1 : index
    %c0_20 = arith.constant 0 : index
    %c0_21 = arith.constant 0 : index
    %65 = vector.load %arg6[%c1, %c0_20, %c0_21] : memref<2x32x32xf32, #tpu.memory_space<vmem>>, vector<1x32x32xf32>
    %66 = vector.shape_cast %65 : vector<1x32x32xf32> to vector<32x32xf32>
    %67 = vector.shape_cast %64 : vector<32x32xf32> to vector<1x32x32xf32>
    tpu.vector_store %arg6[%c1, %c0_20, %c0_21], %67 {strides = array<i32>} : memref<2x32x32xf32, #tpu.memory_space<vmem>>, vector<1x32x32xf32>,
    %68 = tpu.concatenate %27, %42 in 1 : vector<32x1xf32>, vector<32x1xf32> -> vector<32x2xf32>
    %cst_22 = arith.constant 0.000000e+00 : f32
    %69 = vector.broadcast %cst_22 : f32 to vector<32x2xf32>
    %70 = arith.maximumf %68, %69 : vector<32x2xf32>
    %71 = math.sqrt %70 : vector<32x2xf32>
    %cst_23 = arith.constant 0.000000e+00 : f32
    %72 = vector.broadcast %cst_23 : f32 to vector<32x2xf32>
    %73 = arith.subf %72, %71 : vector<32x2xf32>
    %cst_24 = arith.constant 1.000000e+01 : f32
    %74 = vector.broadcast %cst_24 : f32 to vector<32x2xf32>
    %75 = arith.divf %73, %74 : vector<32x2xf32>
    %76 = math.exp %75 : vector<32x2xf32>
    %c0_25 = arith.constant 0 : index
    %c0_26 = arith.constant 0 : index
    %77 = vector.load %arg4[%c0_25, %c0_26] : memref<32x2xf32, #tpu.memory_space<vmem>>, vector<32x2xf32>
    tpu.vector_store %arg4[%c0_25, %c0_26], %76 {strides = array<i32>} : memref<32x2xf32, #tpu.memory_space<vmem>>, vector<32x2xf32>,
    %78 = tpu.concatenate %35, %50 in 1 : vector<32x1xi32>, vector<32x1xi32> -> vector<32x2xi32>
    %c0_27 = arith.constant 0 : index
    %c0_28 = arith.constant 0 : index
    %79 = vector.load %arg5[%c0_27, %c0_28] : memref<32x2xi32, #tpu.memory_space<vmem>>, vector<32x2xi32>
    tpu.vector_store %arg5[%c0_27, %c0_28], %78 {strides = array<i32>} : memref<32x2xi32, #tpu.memory_space<vmem>>, vector<32x2xi32>,
    return
  }
  func.func @transform_0(%arg0: i32) -> (i32, i32) {
    %c0_i32 = arith.constant 0 : i32
    %c0_i32_0 = arith.constant 0 : i32
    %c0_i32_1 = arith.constant 0 : i32
    return %c0_i32, %c0_i32_0 : i32, i32
  }
  func.func @transform_1(%arg0: i32) -> (i32, i32) {
    %c0_i32 = arith.constant 0 : i32
    %c0_i32_0 = arith.constant 0 : i32
    %c0_i32_1 = arith.constant 0 : i32
    return %c0_i32, %c0_i32_0 : i32, i32
  }
  func.func @transform_2(%arg0: i32) -> (i32, i32) {
    %c0_i32 = arith.constant 0 : i32
    %c0_i32_0 = arith.constant 0 : i32
    %c0_i32_1 = arith.constant 0 : i32
    return %c0_i32, %c0_i32_0 : i32, i32
  }
  func.func @transform_3(%arg0: i32) -> (i32, i32) {
    %c0_i32 = arith.constant 0 : i32
    %c0_i32_0 = arith.constant 0 : i32
    return %arg0, %c0_i32 : i32, i32
  }
  func.func @transform_4(%arg0: i32) -> (i32, i32) {
    %c0_i32 = arith.constant 0 : i32
    %c0_i32_0 = arith.constant 0 : i32
    return %arg0, %c0_i32 : i32, i32
  }
  func.func @transform_5(%arg0: i32) -> (i32, i32, i32) {
    %c0_i32 = arith.constant 0 : i32
    %c0_i32_0 = arith.constant 0 : i32
    %c0_i32_1 = arith.constant 0 : i32
    return %c0_i32, %arg0, %c0_i32_0 : i32, i32, i32
  }
}

</mosaic_0001>

<llo_original>
// kernel: tpu_custom_call.1
$region0: #{tpu_custom_call.1}
  #allocation0 [shape = 'u32[]', space=smem, size = 0x4, offset = 0x4, fixed_abs, tag = 'smem constant byte address 0x4 - core index']
  #allocation1 [shape = 'u32[72,128]{1,0:T(1,128)}', space=vmem, size = 0x9000, scoped, tag = 'internal scratch']
  %s0 = inlined_call_operand.vmem [shape: f32[128,32], index: 0, kind: input, shape index: {}]
  %s1 = inlined_call_operand.vmem [shape: f32[128,32], index: 1, kind: input, shape index: {}]
  %s2 = inlined_call_operand.vmem [shape: f32[1,128], index: 2, kind: input, shape index: {}]
  %s3 = inlined_call_operand.vmem [shape: f32[128,2], index: 3, kind: output, shape index: {0}]
  %s4 = inlined_call_operand.vmem [shape: s32[128,2], index: 4, kind: output, shape index: {1}]
  %s5 = inlined_call_operand.vmem [shape: f32[2,128,32], index: 5, kind: output, shape index: {2}]
  %6 = xla_tuple %s3, %s4, %s5
  %s7 = sld [smem:[#allocation0]]
  $region95: #{tpu_custom_call.1} parent=0
    _
  %s9 = ssub.s32 1, %s7
  %s10 = scalar_select 0, %s9, %s7
  $region1: #{tpu_custom_call.1} parent=0
    #allocation2 [shape = 'u8[65536]{0}', space=vmem, size = 0x10000, scoped, tag = 'output window, operand 2']
    loop: start=0, step=1, limit=6
    $region2: #{tpu_custom_call.1} parent=1 // loop_pre_header
      _
    $region3: #{tpu_custom_call.1} parent=1 // loop_header
      %s12 = sphi 0, %s16
      %p13 = scmp.ge.s32.totalorder %s12, 6
      %s20 = sphi 0, %s20
      %s22 = sphi 0, %s20
      %s23 = sphi 0, %s22
      %s37 = sphi 0, %s23
      %s41 = sphi 0, %s41
      %s43 = sphi 0, %s41
      %s44 = sphi 0, %s43
      %s58 = sphi 0, %s44
      %s62 = sphi 0, %s62
      %s64 = sphi 0, %s62
      %s65 = sphi 0, %s64
      %s79 = sphi 0, %s65
      %s85 = sphi 0, %s87
      %s88 = sphi 0, %s85
      %s89 = sphi 0, %s88
      %s105 = sphi 0, %s89
      %s111 = sphi 0, %s113
      %s114 = sphi 0, %s111
      %s115 = sphi 0, %s114
      %s131 = sphi 0, %s115
      %s137 = sphi 0, %s139
      %s140 = sphi 0, %s137
      %s141 = sphi 0, %s140
      %s157 = sphi 0, %s141
    $region4: #{tpu_custom_call.1} parent=1 // loop_header_branch
      %15 = sbr.rel (%p13) target = $region8
    $region5: #{tpu_custom_call.1} parent=1 // loop_body
      %s17 = ssub.s32 %s12, 1
      %s18 = ssub.s32 %s12, 2
      %s19 = sadd.s32 %s12, 1
      %s21 = sadd.s32 %s20, 1
      %p24 = scmp.eq.s32.totalorder %s12, 3
      %p25 = scmp.ne.s32.totalorder %s20, %s22
      %p26 = scmp.eq.s32.totalorder %s12, 0
      %p27 = por %p25, %p26
      %p28 = scmp.ne.s32.totalorder %s20, %s22
      %p29 = scmp.eq.s32.totalorder %s17, 3
      %p30 = por %p28, %p29
      %p31 = scmp.ne.s32.totalorder %s22, %s23
      %p32 = scmp.eq.s32.totalorder %s17, 0
      %p33 = por %p31, %p32
      %p34 = scmp.ne.s32.totalorder %s22, %s23
      %p35 = scmp.eq.s32.totalorder %s18, 3
      %p36 = por %p34, %p35
      %p38 = scmp.ne.s32.totalorder %s23, %s37
      %p39 = scmp.eq.s32.totalorder %s18, 0
      %p40 = por %p38, %p39
      %s42 = sadd.s32 %s41, 1
      %p45 = scmp.eq.s32.totalorder %s12, 3
      %p46 = scmp.ne.s32.totalorder %s41, %s43
      %p47 = scmp.eq.s32.totalorder %s12, 0
      %p48 = por %p46, %p47
      %p49 = scmp.ne.s32.totalorder %s41, %s43
      %p50 = scmp.eq.s32.totalorder %s17, 3
      %p51 = por %p49, %p50
      %p52 = scmp.ne.s32.totalorder %s43, %s44
      %p53 = scmp.eq.s32.totalorder %s17, 0
      %p54 = por %p52, %p53
      %p55 = scmp.ne.s32.totalorder %s43, %s44
      %p56 = scmp.eq.s32.totalorder %s18, 3
      %p57 = por %p55, %p56
      %p59 = scmp.ne.s32.totalorder %s44, %s58
      %p60 = scmp.eq.s32.totalorder %s18, 0
      %p61 = por %p59, %p60
      %s63 = sadd.s32 %s62, 1
      %p66 = scmp.eq.s32.totalorder %s12, 3
      %p67 = scmp.ne.s32.totalorder %s62, %s64
      %p68 = scmp.eq.s32.totalorder %s12, 0
      %p69 = por %p67, %p68
      %p70 = scmp.ne.s32.totalorder %s62, %s64
      %p71 = scmp.eq.s32.totalorder %s17, 3
      %p72 = por %p70, %p71
      %p73 = scmp.ne.s32.totalorder %s64, %s65
      %p74 = scmp.eq.s32.totalorder %s17, 0
      %p75 = por %p73, %p74
      %p76 = scmp.ne.s32.totalorder %s64, %s65
      %p77 = scmp.eq.s32.totalorder %s18, 3
      %p78 = por %p76, %p77
      %p80 = scmp.ne.s32.totalorder %s65, %s79
      %p81 = scmp.eq.s32.totalorder %s18, 0
      %p82 = por %p80, %p81
      %s83 = ssub.s32 %s12, %s19
      %p84 = scmp.eq.s32.totalorder %s83, 0
      %s86 = sadd.s32 %s85, 1
      %s87 = scalar_select %p84, %s85, %s86
      %p90 = pneg %p84
      %p91 = scmp.eq.s32.totalorder %s12, 3
      %p92 = por %p90, %p91
      %p93 = scmp.ne.s32.totalorder %s85, %s88
      %p94 = scmp.eq.s32.totalorder %s12, 0
      %p95 = por %p93, %p94
      %p96 = scmp.ne.s32.totalorder %s85, %s88
      %p97 = scmp.eq.s32.totalorder %s17, 3
      %p98 = por %p96, %p97
      %p99 = scmp.ne.s32.totalorder %s88, %s89
      %p100 = scmp.eq.s32.totalorder %s17, 0
      %p101 = por %p99, %p100
      %p102 = scmp.ne.s32.totalorder %s88, %s89
      %p103 = scmp.eq.s32.totalorder %s18, 3
      %p104 = por %p102, %p103
      %p106 = scmp.ne.s32.totalorder %s89, %s105
      %p107 = scmp.eq.s32.totalorder %s18, 0
      %p108 = por %p106, %p107
      %s109 = ssub.s32 %s12, %s19
      %p110 = scmp.eq.s32.totalorder %s109, 0
      %s112 = sadd.s32 %s111, 1
      %s113 = scalar_select %p110, %s111, %s112
      %p116 = pneg %p110
      %p117 = scmp.eq.s32.totalorder %s12, 3
      %p118 = por %p116, %p117
      %p119 = scmp.ne.s32.totalorder %s111, %s114
      %p120 = scmp.eq.s32.totalorder %s12, 0
      %p121 = por %p119, %p120
      %p122 = scmp.ne.s32.totalorder %s111, %s114
      %p123 = scmp.eq.s32.totalorder %s17, 3
      %p124 = por %p122, %p123
      %p125 = scmp.ne.s32.totalorder %s114, %s115
      %p126 = scmp.eq.s32.totalorder %s17, 0
      %p127 = por %p125, %p126
      %p128 = scmp.ne.s32.totalorder %s114, %s115
      %p129 = scmp.eq.s32.totalorder %s18, 3
      %p130 = por %p128, %p129
      %p132 = scmp.ne.s32.totalorder %s115, %s131
      %p133 = scmp.eq.s32.totalorder %s18, 0
      %p134 = por %p132, %p133
      %s135 = ssub.s32 %s12, %s19
      %p136 = scmp.eq.s32.totalorder %s135, 0
      %s138 = sadd.s32 %s137, 1
      %s139 = scalar_select %p136, %s137, %s138
      %p142 = pneg %p136
      %p143 = scmp.eq.s32.totalorder %s12, 3
      %p144 = por %p142, %p143
      %p145 = scmp.ne.s32.totalorder %s137, %s140
      %p146 = scmp.eq.s32.totalorder %s12, 0
      %p147 = por %p145, %p146
      %p148 = scmp.ne.s32.totalorder %s137, %s140
      %p149 = scmp.eq.s32.totalorder %s17, 3
      %p150 = por %p148, %p149
      %p151 = scmp.ne.s32.totalorder %s140, %s141
      %p152 = scmp.eq.s32.totalorder %s17, 0
      %p153 = por %p151, %p152
      %p154 = scmp.ne.s32.totalorder %s140, %s141
      %p155 = scmp.eq.s32.totalorder %s18, 3
      %p156 = por %p154, %p155
      %p158 = scmp.ne.s32.totalorder %s141, %s157
      %p159 = scmp.eq.s32.totalorder %s18, 0
      %p160 = por %p158, %p159
      %p161 = scmp.le.s32.totalorder 1, %s12
      %p162 = scmp.lt.s32.totalorder %s12, 5
      %p163 = pnand %p161, %p162
      %p164 = pneg %p163
      // Predicated region
      $region9: #{tpu_custom_call.1} parent=5 // pred_check
        _
      $region10: #{tpu_custom_call.1} parent=5 // pred_check_branch
        %166 = sbr.rel (%p163) target = $region12
      $region11: #{tpu_custom_call.1} parent=5 // pred_region
        %s167 = ssub.s32 %s12, 1
        // Predicated region
        $region13: #{tpu_custom_call.1} parent=11 // pred_check
          %p168 = pneg %p33
        $region14: #{tpu_custom_call.1} parent=11 // pred_check_branch
          %170 = sbr.rel (%p168) target = $region16
        $region15: #{tpu_custom_call.1} parent=11 // pred_region
          _
        $region16: #{tpu_custom_call.1} parent=11 // pred_fallthru
          _
        // Predicated region
        $region17: #{tpu_custom_call.1} parent=11 // pred_check
          %p171 = pneg %p54
        $region18: #{tpu_custom_call.1} parent=11 // pred_check_branch
          %173 = sbr.rel (%p171) target = $region20
        $region19: #{tpu_custom_call.1} parent=11 // pred_region
          _
        $region20: #{tpu_custom_call.1} parent=11 // pred_fallthru
          _
        // Predicated region
        $region21: #{tpu_custom_call.1} parent=11 // pred_check
          %p174 = pneg %p75
        $region22: #{tpu_custom_call.1} parent=11 // pred_check_branch
          %176 = sbr.rel (%p174) target = $region24
        $region23: #{tpu_custom_call.1} parent=11 // pred_region
          _
        $region24: #{tpu_custom_call.1} parent=11 // pred_fallthru
          _
      $region12: #{tpu_custom_call.1} parent=5 // pred_fallthru
        _
      %p177 = scmp.lt.s32.totalorder %s12, 4
      // Predicated region
      $region25: #{tpu_custom_call.1} parent=5 // pred_check
        %p178 = pneg %p177
      $region26: #{tpu_custom_call.1} parent=5 // pred_check_branch
        %180 = sbr.rel (%p178) target = $region28
      $region27: #{tpu_custom_call.1} parent=5 // pred_region
        _
      $region28: #{tpu_custom_call.1} parent=5 // pred_fallthru
        _
      %p181 = scmp.le.s32.totalorder 1, %s12
      %p182 = scmp.lt.s32.totalorder %s12, 5
      %p183 = pnand %p181, %p182
      %p184 = pneg %p183
      // Predicated region
      $region29: #{tpu_custom_call.1} parent=5 // pred_check
        _
      $region30: #{tpu_custom_call.1} parent=5 // pred_check_branch
        %186 = sbr.rel (%p183) target = $region32
      $region31: #{tpu_custom_call.1} parent=5 // pred_region
        %s187 = ssub.s32 %s12, 1
        %p188 = pneg %p33
        %p189 = pneg %p30
        %p190 = pneg %p54
        %p191 = pneg %p51
        %p192 = pneg %p75
        %p193 = pneg %p72
        %p194 = pneg %p101
        %p195 = pneg %p98
        %s196 = smul.u32 4, %s17
        %p197 = scmp.lt.s32.totalorder %s196, 15
        %s198 = scalar_select %p197, %s196, 15
        %s199 = smul.addr %s198, 8
        %s200 = scalar_lea.vmem %s3, %s199
        %p201 = pneg %p127
        %p202 = pneg %p124
        %s203 = smul.u32 4, %s17
        %p204 = scmp.lt.s32.totalorder %s203, 15
        %s205 = scalar_select %p204, %s203, 15
        %s206 = smul.addr %s205, 8
        %s207 = scalar_lea.vmem %s4, %s206
        %p208 = pneg %p153
        %p209 = pneg %p150
        %s210 = sand.u32 %s140, 1
        %s211 = sand.u32 %s140, 1
        %s212 = smul.addr %s211, 64
        %s213 = scalar_lea.vmem [#allocation2], %s212
        %s214 = smul.u32 4, %s17
        %p215 = scmp.lt.s32.totalorder %s214, 15
        %s216 = scalar_select %p215, %s214, 15
        %s217 = smul.addr %s216, 8
        %s218 = scalar_lea.vmem %s3, %s217
        %s219 = smul.u32 4, %s17
        %s220 = smul.u32 4, %s17
        %p221 = scmp.lt.s32.totalorder %s220, 15
        %s222 = scalar_select %p221, %s220, 15
        %s223 = smul.addr %s222, 8
        %s224 = scalar_lea.vmem %s4, %s223
        %s225 = smul.u32 4, %s17
        %s226 = smul.u32 4, %s17
        %s227 = smul.u32 %s17, 32
        %s228 = scalar_lea.vmem %s0, %s227
        %v229 = vld [vmem:[%s228] sm:$0xff]
        %v230 = vld [vmem:[%s228 + $0x8] sm:$0xff]
        %v231 = vld [vmem:[%s228 + $0x10] sm:$0xff]
        %v232 = vld [vmem:[%s228 + $0x18] sm:$0xff]
        %v233 = vld [vmem:[%s1] sm:$0xff]
        %v234 = vld [vmem:[%s1 + $0x8] sm:$0xff]
        %v235 = vld [vmem:[%s1 + $0x10] sm:$0xff]
        %v236 = vld [vmem:[%s1 + $0x18] sm:$0xff]
        %v237 = vld [vmem:[%s1 + $0x20] sm:$0xff]
        %v238 = vld [vmem:[%s1 + $0x28] sm:$0xff]
        %v239 = vld [vmem:[%s1 + $0x30] sm:$0xff]
        %v240 = vld [vmem:[%s1 + $0x38] sm:$0xff]
        %v241 = vld [vmem:[%s1 + $0x40] sm:$0xff]
        %v242 = vld [vmem:[%s1 + $0x48] sm:$0xff]
        %v243 = vld [vmem:[%s1 + $0x50] sm:$0xff]
        %v244 = vld [vmem:[%s1 + $0x58] sm:$0xff]
        %v245 = vld [vmem:[%s1 + $0x60] sm:$0xff]
        %v246 = vld [vmem:[%s1 + $0x68] sm:$0xff]
        %v247 = vld [vmem:[%s1 + $0x70] sm:$0xff]
        %v248 = vld [vmem:[%s1 + $0x78] sm:$0xff]
        %v249 = vld [vmem:[%s0] sm:$0xff]
        %v250 = vld [vmem:[%s0 + $0x8] sm:$0xff]
        %v251 = vld [vmem:[%s0 + $0x10] sm:$0xff]
        %v252 = vld [vmem:[%s0 + $0x18] sm:$0xff]
        %v253 = vld [vmem:[%s0 + $0x20] sm:$0xff]
        %v254 = vld [vmem:[%s0 + $0x28] sm:$0xff]
        %v255 = vld [vmem:[%s0 + $0x30] sm:$0xff]
        %v256 = vld [vmem:[%s0 + $0x38] sm:$0xff]
        %v257 = vld [vmem:[%s0 + $0x40] sm:$0xff]
        %v258 = vld [vmem:[%s0 + $0x48] sm:$0xff]
        %v259 = vld [vmem:[%s0 + $0x50] sm:$0xff]
        %v260 = vld [vmem:[%s0 + $0x58] sm:$0xff]
        %v261 = vld [vmem:[%s0 + $0x60] sm:$0xff]
        %v262 = vld [vmem:[%s0 + $0x68] sm:$0xff]
        %v263 = vld [vmem:[%s0 + $0x70] sm:$0xff]
        %v264 = vld [vmem:[%s0 + $0x78] sm:$0xff]
        %s265 = scalar_lea.vmem %s1, %s227
        %v266 = vld [vmem:[%s265] sm:$0xff]
        %v267 = vld [vmem:[%s265 + $0x8] sm:$0xff]
        %v268 = vld [vmem:[%s265 + $0x10] sm:$0xff]
        %v269 = vld [vmem:[%s265 + $0x18] sm:$0xff]
        %v270 = vld [vmem:[%s2] sm:$0x1]
        %v271 = vmul.f32 %v229, %v229
        %v272 = vmul.f32 %v230, %v230
        %v273 = vmul.f32 %v231, %v231
        %v274 = vmul.f32 %v232, %v232
        %vm275 = vcmask 261120
        %v276 = vsel %vm275, %v271, 0.0
        %277 = vadd.xlane.f32.xlu0 %v276
        %v278 = vpop.xlane.xlu0 %277
        %v279 = vsel %vm275, %v272, 0.0
        %280 = vadd.xlane.f32.xlu0 %v279
        %v281 = vpop.xlane.xlu0 %280
        %v282 = vsel %vm275, %v273, 0.0
        %283 = vadd.xlane.f32.xlu0 %v282
        %v284 = vpop.xlane.xlu0 %283
        %v285 = vsel %vm275, %v274, 0.0
        %286 = vadd.xlane.f32.xlu0 %v285
        %v287 = vpop.xlane.xlu0 %286
        %v289 = vsel %vm275, %v229, 0
        %v292 = vsel %vm275, %v230, 0
        %v295 = vsel %vm275, %v231, 0
        %v298 = vsel %vm275, %v232, 0
        %v301 = vsel %vm275, %v233, 0
        %v304 = vsel %vm275, %v234, 0
        %v307 = vsel %vm275, %v235, 0
        %v310 = vsel %vm275, %v236, 0
        %v313 = vsel %vm275, %v237, 0
        %v316 = vsel %vm275, %v238, 0
        %v319 = vsel %vm275, %v239, 0
        %v322 = vsel %vm275, %v240, 0
        %v325 = vsel %vm275, %v241, 0
        %v328 = vsel %vm275, %v242, 0
        %v331 = vsel %vm275, %v243, 0
        %v334 = vsel %vm275, %v244, 0
        %v337 = vsel %vm275, %v245, 0
        %v340 = vsel %vm275, %v246, 0
        %v343 = vsel %vm275, %v247, 0
        %v346 = vsel %vm275, %v248, 0
        %348 = vmatpush.xpose.msra.mxu0 %v346
        %349 = vmatpush.xpose.msra.mxu0 %v343
        %350 = vmatpush.xpose.msra.mxu0 %v340
        %351 = vmatpush.xpose.msra.mxu0 %v337
        %352 = vmatpush.xpose.msra.mxu0 %v334
        %353 = vmatpush.xpose.msra.mxu0 %v331
        %354 = vmatpush.xpose.msra.mxu0 %v328
        %355 = vmatpush.xpose.msra.mxu0 %v325
        %356 = vmatpush.xpose.msra.mxu0 %v322
        %357 = vmatpush.xpose.msra.mxu0 %v319
        %358 = vmatpush.xpose.msra.mxu0 %v316
        %359 = vmatpush.xpose.msra.mxu0 %v313
        %360 = vmatpush.xpose.msra.mxu0 %v310
        %361 = vmatpush.xpose.msra.mxu0 %v307
        %362 = vmatpush.xpose.msra.mxu0 %v304
        %363 = vmatpush.xpose.msra.mxu0 %v301
        %364 = vmatmul.f32.gmra.mxu0 %v289
        %v365 = vpop.f32.mrf.mxu0
        %v366 = vadd.f32 0.0, %v365
        %367 = vmatmul.f32.gmra.mxu0 %v292
        %v368 = vpop.f32.mrf.mxu0
        %v369 = vadd.f32 0.0, %v368
        %370 = vmatmul.f32.gmra.mxu0 %v295
        %v371 = vpop.f32.mrf.mxu0
        %v372 = vadd.f32 0.0, %v371
        %373 = vmatmul.f32.gmra.mxu0 %v298
        %v374 = vpop.f32.mrf.mxu0
        %v375 = vadd.f32 0.0, %v374
        %376 = vdwg.mxu0
        %v378 = vperm.slane %v270, 0
        %v380 = vadd.f32 %v278, %v378
        %v381 = vadd.f32 %v281, %v378
        %v382 = vadd.f32 %v284, %v378
        %v383 = vadd.f32 %v287, %v378
        %v384 = vmul.f32 %v366, 2.0
        %v385 = vmul.f32 %v369, 2.0
        %v386 = vmul.f32 %v372, 2.0
        %v387 = vmul.f32 %v375, 2.0
        %v388 = vsub.f32 %v380, %v384
        %v389 = vsub.f32 %v381, %v385
        %v390 = vsub.f32 %v382, %v386
        %v391 = vsub.f32 %v383, %v387
        %v392 = vlaneseq
        %v393 = vand.u32 %v392, 127
        %vm394 = vcmp.lt.s32.totalorder %v393, 120
        %v395 = vsel %vm394, 1, 0
        %vm396 = vcmp.eq.s32.totalorder %v395, 1
        %v397 = vsel %vm396, %v388, inf
        %v398 = vsel %vm396, %v389, inf
        %v399 = vsel %vm396, %v390, inf
        %v400 = vsel %vm396, %v391, inf
        %401 = vmin.xlane.f32.xlu0 %v397
        %v402 = vpop.xlane.xlu0 %401
        %403 = vmin.xlane.f32.xlu0 %v398
        %v404 = vpop.xlane.xlu0 %403
        %405 = vmin.xlane.f32.xlu0 %v399
        %v406 = vpop.xlane.xlu0 %405
        %407 = vmin.xlane.f32.xlu0 %v400
        %v408 = vpop.xlane.xlu0 %407
        %vm409 = vcmp.eq.f32.partialorder %v397, %v402
        %vm410 = vcmp.eq.f32.partialorder %v398, %v404
        %vm411 = vcmp.eq.f32.partialorder %v399, %v406
        %vm412 = vcmp.eq.f32.partialorder %v400, %v408
        %v413 = vsel %vm409, %v393, 128
        %v414 = vsel %vm410, %v393, 128
        %v415 = vsel %vm411, %v393, 128
        %v416 = vsel %vm412, %v393, 128
        %v417 = vand.u32 %v413, 65535
        %v418 = vshra.s32 %v413, 16
        %v419 = vcvt.s32.f32 %v417
        %v420 = vcvt.s32.f32 %v418
        %421 = vmin.xlane.f32.xlu0 %v420
        %v422 = vpop.xlane.xlu0 %421
        %vm423 = vcmp.eq.f32.partialorder %v420, %v422
        %v424 = vsel %vm423, %v419, inf
        %425 = vmin.xlane.f32.xlu0 %v424
        %v426 = vpop.xlane.xlu0 %425
        %v427 = vcvt.f32.s32 %v426
        %v428 = vcvt.f32.s32 %v422
        %v429 = vshll.u32 %v428, 16
        %v430 = vadd.s32 %v429, %v427
        %v431 = vand.u32 %v414, 65535
        %v432 = vshra.s32 %v414, 16
        %v433 = vcvt.s32.f32 %v431
        %v434 = vcvt.s32.f32 %v432
        %435 = vmin.xlane.f32.xlu0 %v434
        %v436 = vpop.xlane.xlu0 %435
        %vm437 = vcmp.eq.f32.partialorder %v434, %v436
        %v438 = vsel %vm437, %v433, inf
        %439 = vmin.xlane.f32.xlu0 %v438
        %v440 = vpop.xlane.xlu0 %439
        %v441 = vcvt.f32.s32 %v440
        %v442 = vcvt.f32.s32 %v436
        %v443 = vshll.u32 %v442, 16
        %v444 = vadd.s32 %v443, %v441
        %v445 = vand.u32 %v415, 65535
        %v446 = vshra.s32 %v415, 16
        %v447 = vcvt.s32.f32 %v445
        %v448 = vcvt.s32.f32 %v446
        %449 = vmin.xlane.f32.xlu0 %v448
        %v450 = vpop.xlane.xlu0 %449
        %vm451 = vcmp.eq.f32.partialorder %v448, %v450
        %v452 = vsel %vm451, %v447, inf
        %453 = vmin.xlane.f32.xlu0 %v452
        %v454 = vpop.xlane.xlu0 %453
        %v455 = vcvt.f32.s32 %v454
        %v456 = vcvt.f32.s32 %v450
        %v457 = vshll.u32 %v456, 16
        %v458 = vadd.s32 %v457, %v455
        %v459 = vand.u32 %v416, 65535
        %v460 = vshra.s32 %v416, 16
        %v461 = vcvt.s32.f32 %v459
        %v462 = vcvt.s32.f32 %v460
        %463 = vmin.xlane.f32.xlu0 %v462
        %v464 = vpop.xlane.xlu0 %463
        %vm465 = vcmp.eq.f32.partialorder %v462, %v464
        %v466 = vsel %vm465, %v461, inf
        %467 = vmin.xlane.f32.xlu0 %v466
        %v468 = vpop.xlane.xlu0 %467
        %v469 = vcvt.f32.s32 %v468
        %v470 = vcvt.f32.s32 %v464
        %v471 = vshll.u32 %v470, 16
        %v472 = vadd.s32 %v471, %v469
        %vm473 = vcmp.eq.s32.totalorder %v393, %v430
        %vm474 = vcmp.eq.s32.totalorder %v393, %v444
        %vm475 = vcmp.eq.s32.totalorder %v393, %v458
        %vm476 = vcmp.eq.s32.totalorder %v393, %v472
        %v477 = vsel %vm473, inf, %v397
        %v478 = vsel %vm474, inf, %v398
        %v479 = vsel %vm475, inf, %v399
        %v480 = vsel %vm476, inf, %v400
        %481 = vmin.xlane.f32.xlu0 %v477
        %v482 = vpop.xlane.xlu0 %481
        %483 = vmin.xlane.f32.xlu0 %v478
        %v484 = vpop.xlane.xlu0 %483
        %485 = vmin.xlane.f32.xlu0 %v479
        %v486 = vpop.xlane.xlu0 %485
        %487 = vmin.xlane.f32.xlu0 %v480
        %v488 = vpop.xlane.xlu0 %487
        %vm489 = vcmp.eq.f32.partialorder %v477, %v482
        %vm490 = vcmp.eq.f32.partialorder %v478, %v484
        %vm491 = vcmp.eq.f32.partialorder %v479, %v486
        %vm492 = vcmp.eq.f32.partialorder %v480, %v488
        %v493 = vsel %vm489, %v393, 128
        %v494 = vsel %vm490, %v393, 128
        %v495 = vsel %vm491, %v393, 128
        %v496 = vsel %vm492, %v393, 128
        %v497 = vand.u32 %v493, 65535
        %v498 = vshra.s32 %v493, 16
        %v499 = vcvt.s32.f32 %v497
        %v500 = vcvt.s32.f32 %v498
        %501 = vmin.xlane.f32.xlu0 %v500
        %v502 = vpop.xlane.xlu0 %501
        %vm503 = vcmp.eq.f32.partialorder %v500, %v502
        %v504 = vsel %vm503, %v499, inf
        %505 = vmin.xlane.f32.xlu0 %v504
        %v506 = vpop.xlane.xlu0 %505
        %v507 = vcvt.f32.s32 %v506
        %v508 = vcvt.f32.s32 %v502
        %v509 = vshll.u32 %v508, 16
        %v510 = vadd.s32 %v509, %v507
        %v511 = vand.u32 %v494, 65535
        %v512 = vshra.s32 %v494, 16
        %v513 = vcvt.s32.f32 %v511
        %v514 = vcvt.s32.f32 %v512
        %515 = vmin.xlane.f32.xlu0 %v514
        %v516 = vpop.xlane.xlu0 %515
        %vm517 = vcmp.eq.f32.partialorder %v514, %v516
        %v518 = vsel %vm517, %v513, inf
        %519 = vmin.xlane.f32.xlu0 %v518
        %v520 = vpop.xlane.xlu0 %519
        %v521 = vcvt.f32.s32 %v520
        %v522 = vcvt.f32.s32 %v516
        %v523 = vshll.u32 %v522, 16
        %v524 = vadd.s32 %v523, %v521
        %v525 = vand.u32 %v495, 65535
        %v526 = vshra.s32 %v495, 16
        %v527 = vcvt.s32.f32 %v525
        %v528 = vcvt.s32.f32 %v526
        %529 = vmin.xlane.f32.xlu0 %v528
        %v530 = vpop.xlane.xlu0 %529
        %vm531 = vcmp.eq.f32.partialorder %v528, %v530
        %v532 = vsel %vm531, %v527, inf
        %533 = vmin.xlane.f32.xlu0 %v532
        %v534 = vpop.xlane.xlu0 %533
        %v535 = vcvt.f32.s32 %v534
        %v536 = vcvt.f32.s32 %v530
        %v537 = vshll.u32 %v536, 16
        %v538 = vadd.s32 %v537, %v535
        %v539 = vand.u32 %v496, 65535
        %v540 = vshra.s32 %v496, 16
        %v541 = vcvt.s32.f32 %v539
        %v542 = vcvt.s32.f32 %v540
        %543 = vmin.xlane.f32.xlu0 %v542
        %v544 = vpop.xlane.xlu0 %543
        %vm545 = vcmp.eq.f32.partialorder %v542, %v544
        %v546 = vsel %vm545, %v541, inf
        %547 = vmin.xlane.f32.xlu0 %v546
        %v548 = vpop.xlane.xlu0 %547
        %v549 = vcvt.f32.s32 %v548
        %v550 = vcvt.f32.s32 %v544
        %v551 = vshll.u32 %v550, 16
        %v552 = vadd.s32 %v551, %v549
        %vm553 = vcmp.eq.s32.totalorder %v393, %v510
        %vm554 = vcmp.eq.s32.totalorder %v393, %v524
        %vm555 = vcmp.eq.s32.totalorder %v393, %v538
        %vm556 = vcmp.eq.s32.totalorder %v393, %v552
        %v557 = vsel %vm473, 1, 0
        %v558 = vsel %vm474, 1, 0
        %v559 = vsel %vm475, 1, 0
        %v560 = vsel %vm476, 1, 0
        %v561 = vsel %vm553, 1, 0
        %v562 = vsel %vm554, 1, 0
        %v563 = vsel %vm555, 1, 0
        %v564 = vsel %vm556, 1, 0
        %v565 = vcvt.s32.f32 %v557
        %v566 = vcvt.s32.f32 %v558
        %v567 = vcvt.s32.f32 %v559
        %v568 = vcvt.s32.f32 %v560
        %v569 = vcvt.s32.f32 %v561
        %v570 = vcvt.s32.f32 %v562
        %v571 = vcvt.s32.f32 %v563
        %v572 = vcvt.s32.f32 %v564
        %573 = vmatpush.msra.mxu0 %v264
        %574 = vmatpush.msra.mxu0 %v263
        %575 = vmatpush.msra.mxu0 %v262
        %576 = vmatpush.msra.mxu0 %v261
        %577 = vmatpush.msra.mxu0 %v260
        %578 = vmatpush.msra.mxu0 %v259
        %579 = vmatpush.msra.mxu0 %v258
        %580 = vmatpush.msra.mxu0 %v257
        %581 = vmatpush.msra.mxu0 %v256
        %582 = vmatpush.msra.mxu0 %v255
        %583 = vmatpush.msra.mxu0 %v254
        %584 = vmatpush.msra.mxu0 %v253
        %585 = vmatpush.msra.mxu0 %v252
        %586 = vmatpush.msra.mxu0 %v251
        %587 = vmatpush.msra.mxu0 %v250
        %588 = vmatpush.msra.mxu0 %v249
        %589 = vmatmul.f32.gmra.mxu0 %v565
        %v590 = vpop.f32.mrf.mxu0
        %v591 = vadd.f32 0.0, %v590
        %592 = vmatmul.f32.gmra.mxu0 %v566
        %v593 = vpop.f32.mrf.mxu0
        %v594 = vadd.f32 0.0, %v593
        %595 = vmatmul.f32.gmra.mxu0 %v567
        %v596 = vpop.f32.mrf.mxu0
        %v597 = vadd.f32 0.0, %v596
        %598 = vmatmul.f32.gmra.mxu0 %v568
        %v599 = vpop.f32.mrf.mxu0
        %v600 = vadd.f32 0.0, %v599
        %601 = vmatmul.f32.gmra.mxu0 %v569
        %v602 = vpop.f32.mrf.mxu0
        %v603 = vadd.f32 0.0, %v602
        %604 = vmatmul.f32.gmra.mxu0 %v570
        %v605 = vpop.f32.mrf.mxu0
        %v606 = vadd.f32 0.0, %v605
        %607 = vmatmul.f32.gmra.mxu0 %v571
        %v608 = vpop.f32.mrf.mxu0
        %v609 = vadd.f32 0.0, %v608
        %610 = vmatmul.f32.gmra.mxu0 %v572
        %v611 = vpop.f32.mrf.mxu0
        %v612 = vadd.f32 0.0, %v611
        %613 = vdwg.mxu0
        %v614 = vsub.f32 %v266, %v591
        %v615 = vsub.f32 %v267, %v594
        %v616 = vsub.f32 %v268, %v597
        %v617 = vsub.f32 %v269, %v600
        %618 = vst.msk [vmem:[%s213] sm:$0xff] %vm275, %v614
        %619 = vst.msk [vmem:[%s213 + $0x8] sm:$0xff] %vm275, %v615
        %620 = vst.msk [vmem:[%s213 + $0x10] sm:$0xff] %vm275, %v616
        %621 = vst.msk [vmem:[%s213 + $0x18] sm:$0xff] %vm275, %v617
        %v622 = vsub.f32 %v266, %v603
        %v623 = vsub.f32 %v267, %v606
        %v624 = vsub.f32 %v268, %v609
        %v625 = vsub.f32 %v269, %v612
        %s626 = scalar_lea.vmem %s213, 32 [#allocation2]
        %627 = vst.msk [vmem:[%s626] sm:$0xff] %vm275, %v622
        %628 = vst.msk [vmem:[%s626 + $0x8] sm:$0xff] %vm275, %v623
        %629 = vst.msk [vmem:[%s626 + $0x10] sm:$0xff] %vm275, %v624
        %630 = vst.msk [vmem:[%s626 + $0x18] sm:$0xff] %vm275, %v625
        %vm631 = vcmask 7168
        %v632 = vsel %vm631, %v402, %v482
        %v633 = vsel %vm631, %v404, %v484
        %v634 = vsel %vm631, %v406, %v486
        %v635 = vsel %vm631, %v408, %v488
        %v636 = vmax.f32 %v632, 0.0
        %v637 = vmax.f32 %v633, 0.0
        %v638 = vmax.f32 %v634, 0.0
        %v639 = vmax.f32 %v635, 0.0
        %v640 = vrsqrt.pop %v636
        %v641 = vmul.f32 %v640, %v636
        %v642 = vmul.f32 %v641, %v640
        %v643 = vmul.f32 0.5, %v642
        %v644 = vsub.f32 1.5, %v643
        %v645 = vmul.f32 %v640, %v644
        %v646 = vmul.f32 %v636, %v645
        %vm647 = vcmp.eq.f32.partialorder %v636, inf
        %v648 = vsel %vm647, %v636, %v646
        %vm649 = vcmp.eq.f32.partialorder %v636, 0.0
        %v650 = vand.u32 %v636, 2147483648
        %v651 = vsel %vm649, %v650, %v648
        %v652 = vrsqrt.pop %v637
        %v653 = vmul.f32 %v652, %v637
        %v654 = vmul.f32 %v653, %v652
        %v655 = vmul.f32 0.5, %v654
        %v656 = vsub.f32 1.5, %v655
        %v657 = vmul.f32 %v652, %v656
        %v658 = vmul.f32 %v637, %v657
        %vm659 = vcmp.eq.f32.partialorder %v637, inf
        %v660 = vsel %vm659, %v637, %v658
        %vm661 = vcmp.eq.f32.partialorder %v637, 0.0
        %v662 = vand.u32 %v637, 2147483648
        %v663 = vsel %vm661, %v662, %v660
        %v664 = vrsqrt.pop %v638
        %v665 = vmul.f32 %v664, %v638
        %v666 = vmul.f32 %v665, %v664
        %v667 = vmul.f32 0.5, %v666
        %v668 = vsub.f32 1.5, %v667
        %v669 = vmul.f32 %v664, %v668
        %v670 = vmul.f32 %v638, %v669
        %vm671 = vcmp.eq.f32.partialorder %v638, inf
        %v672 = vsel %vm671, %v638, %v670
        %vm673 = vcmp.eq.f32.partialorder %v638, 0.0
        %v674 = vand.u32 %v638, 2147483648
        %v675 = vsel %vm673, %v674, %v672
        %v676 = vrsqrt.pop %v639
        %v677 = vmul.f32 %v676, %v639
        %v678 = vmul.f32 %v677, %v676
        %v679 = vmul.f32 0.5, %v678
        %v680 = vsub.f32 1.5, %v679
        %v681 = vmul.f32 %v676, %v680
        %v682 = vmul.f32 %v639, %v681
        %vm683 = vcmp.eq.f32.partialorder %v639, inf
        %v684 = vsel %vm683, %v639, %v682
        %vm685 = vcmp.eq.f32.partialorder %v639, 0.0
        %v686 = vand.u32 %v639, 2147483648
        %v687 = vsel %vm685, %v686, %v684
        %v688 = vsub.f32 0.0, %v651
        %v689 = vsub.f32 0.0, %v663
        %v690 = vsub.f32 0.0, %v675
        %v691 = vsub.f32 0.0, %v687
        %v692 = vrcp.pop 10.0
        %v693 = vmul.f32 10.0, %v692
        %v694 = vsub.f32 1.0, %v693
        %v695 = vmul.f32 %v692, %v694
        %v696 = vadd.f32 %v692, %v695
        %vm697 = vweird.f32 %v692
        %v698 = vsel %vm697, %v692, %v696
        %v699 = vmul.f32 %v688, %v698
        %v700 = vmul.f32 %v689, %v698
        %v701 = vmul.f32 %v690, %v698
        %v702 = vmul.f32 %v691, %v698
        %v703 = vmul.f32 %v699, 1.442695
        %v704 = vpow.pop %v703
        %v705 = vmul.f32 %v700, 1.442695
        %v706 = vpow.pop %v705
        %v707 = vmul.f32 %v701, 1.442695
        %v708 = vpow.pop %v707
        %v709 = vmul.f32 %v702, 1.442695
        %v710 = vpow.pop %v709
        %vm711 = vcmask 15360
        %712 = vst.msk [vmem:[%s218] sm:$0xff] %vm711, %v704
        %713 = vst.msk [vmem:[%s218 + $0x8] sm:$0xff] %vm711, %v706
        %714 = vst.msk [vmem:[%s218 + $0x10] sm:$0xff] %vm711, %v708
        %715 = vst.msk [vmem:[%s218 + $0x18] sm:$0xff] %vm711, %v710
        %v716 = vsel %vm631, %v430, %v510
        %v717 = vsel %vm631, %v444, %v524
        %v718 = vsel %vm631, %v458, %v538
        %v719 = vsel %vm631, %v472, %v552
        %720 = vst.msk [vmem:[%s224] sm:$0xff] %vm711, %v716
        %721 = vst.msk [vmem:[%s224 + $0x8] sm:$0xff] %vm711, %v717
        %722 = vst.msk [vmem:[%s224 + $0x10] sm:$0xff] %vm711, %v718
        %723 = vst.msk [vmem:[%s224 + $0x18] sm:$0xff] %vm711, %v719
        %s724 = smul.u32 4, %s17
        %p725 = scmp.lt.s32.totalorder %s724, 15
        %s726 = scalar_select %p725, %s724, 15
        %s727 = smul.addr %s726, 8
        %s728 = scalar_lea.vmem %s3, %s727
        %s729 = smul.u32 4, %s17
        %p730 = scmp.lt.s32.totalorder %s729, 15
        %s731 = scalar_select %p730, %s729, 15
        %s732 = smul.addr %s731, 8
        %s733 = scalar_lea.vmem %s4, %s732
        %s734 = sand.u32 %s140, 1
        %s735 = sand.u32 %s140, 1
        %s736 = smul.addr %s735, 64
        %s737 = scalar_lea.vmem [#allocation2], %s736
        // Predicated region
        $region33: #{tpu_custom_call.1} parent=31 // pred_check
          %p738 = pneg %p98
        $region34: #{tpu_custom_call.1} parent=31 // pred_check_branch
          %740 = sbr.rel (%p738) target = $region36
        $region35: #{tpu_custom_call.1} parent=31 // pred_region
          %s741 = smul.u32 4, %s17
        $region36: #{tpu_custom_call.1} parent=31 // pred_fallthru
          _
        // Predicated region
        $region37: #{tpu_custom_call.1} parent=31 // pred_check
          %p742 = pneg %p124
        $region38: #{tpu_custom_call.1} parent=31 // pred_check_branch
          %744 = sbr.rel (%p742) target = $region40
        $region39: #{tpu_custom_call.1} parent=31 // pred_region
          %s745 = smul.u32 4, %s17
        $region40: #{tpu_custom_call.1} parent=31 // pred_fallthru
          _
        // Predicated region
        $region41: #{tpu_custom_call.1} parent=31 // pred_check
          %p746 = pneg %p150
        $region42: #{tpu_custom_call.1} parent=31 // pred_check_branch
          %748 = sbr.rel (%p746) target = $region44
        $region43: #{tpu_custom_call.1} parent=31 // pred_region
          %s749 = smul.u32 4, %s17
          %s750 = smul.addr %s749, 8
          %s751 = scalar_lea.vmem %s5, %s750
          // Predicated region
          $region45: #{tpu_custom_call.1} parent=43 // pred_check
            _
          $region46: #{tpu_custom_call.1} parent=43 // pred_check_branch
            %753 = sbr.rel (0) target = $region48
          $region47: #{tpu_custom_call.1} parent=43 // pred_region
            // Predicated region
            $region49: #{tpu_custom_call.1} parent=47 // pred_check
              _
            $region50: #{tpu_custom_call.1} parent=47 // pred_check_branch
              %755 = sbr.rel (0) target = $region52
            $region51: #{tpu_custom_call.1} parent=47 // pred_region
              // Predicated region
              $region64: #{tpu_custom_call.1} parent=51 // pred_check
                _
              $region65: #{tpu_custom_call.1} parent=51 // pred_check_branch
                %785 = sbr.rel (0) target = $region67
              $region66: #{tpu_custom_call.1} parent=51 // pred_region
                loop: start=0, step=1, limit=1
                $region68: #{tpu_custom_call.1} parent=66 // loop_pre_header
                  _
                $region69: #{tpu_custom_call.1} parent=66 // loop_header
                  %s787 = sphi 0, %s791
                  %p788 = scmp.ge.s32.totalorder %s787, 1
                  %s792 = sphi %s737, %s737
                  %s793 = sphi %s751, %s751
                $region70: #{tpu_custom_call.1} parent=66 // loop_header_branch
                  %790 = sbr.rel (%p788) target = $region74
                $region71: #{tpu_custom_call.1} parent=66 // loop_body
                  %v794 = vld [vmem:[%s792] sm:$0xff]
                  %795 = vst [vmem:[%s793] sm:$0xff] %v794
                  %v796 = vld [vmem:[%s792 + $0x8] sm:$0xff]
                  %797 = vst [vmem:[%s793 + $0x8] sm:$0xff] %v796
                  %v798 = vld [vmem:[%s792 + $0x10] sm:$0xff]
                  %799 = vst [vmem:[%s793 + $0x10] sm:$0xff] %v798
                  %v800 = vld [vmem:[%s792 + $0x18] sm:$0xff]
                  %801 = vst [vmem:[%s793 + $0x18] sm:$0xff] %v800
                  %v802 = vld [vmem:[%s792 + $0x20] sm:$0xff]
                  %803 = vst [vmem:[%s793 + $0x80] sm:$0xff] %v802
                  %v804 = vld [vmem:[%s792 + $0x28] sm:$0xff]
                  %805 = vst [vmem:[%s793 + $0x88] sm:$0xff] %v804
                  %v806 = vld [vmem:[%s792 + $0x30] sm:$0xff]
                  %807 = vst [vmem:[%s793 + $0x90] sm:$0xff] %v806
                  %v808 = vld [vmem:[%s792 + $0x38] sm:$0xff]
                  %809 = vst [vmem:[%s793 + $0x98] sm:$0xff] %v808
                $region72: #{tpu_custom_call.1} parent=66 // loop_footer
                  %s791 = sadd.s32 1, %s787
                $region73: #{tpu_custom_call.1} parent=66 // loop_footer_branch
                  %786 = sbr.rel target = $region69
                $region74: #{tpu_custom_call.1} parent=66 // loop_exit
                  _
              $region67: #{tpu_custom_call.1} parent=51 // pred_fallthru
                _
              // Predicated region
              $region75: #{tpu_custom_call.1} parent=51 // pred_check
                _
              $region76: #{tpu_custom_call.1} parent=51 // pred_check_branch
                %811 = sbr.rel target = $region78
              $region77: #{tpu_custom_call.1} parent=51 // pred_region
                _
              $region78: #{tpu_custom_call.1} parent=51 // pred_fallthru
                _
            $region52: #{tpu_custom_call.1} parent=47 // pred_fallthru
              _
            // Predicated region
            $region53: #{tpu_custom_call.1} parent=47 // pred_check
              _
            $region54: #{tpu_custom_call.1} parent=47 // pred_check_branch
              %757 = sbr.rel target = $region56
            $region55: #{tpu_custom_call.1} parent=47 // pred_region
              %s759 = ssub.s32 256, 1
              loop: start=0, step=1, limit=1
              $region57: #{tpu_custom_call.1} parent=55 // loop_pre_header
                _
              $region58: #{tpu_custom_call.1} parent=55 // loop_header
                %s761 = sphi 0, %s765
                %p762 = scmp.ge.s32.totalorder %s761, 1
                %s766 = sphi %s737, %s737
                %s767 = sphi %s751, %s751
              $region59: #{tpu_custom_call.1} parent=55 // loop_header_branch
                %764 = sbr.rel (%p762) target = $region63
              $region60: #{tpu_custom_call.1} parent=55 // loop_body
                %v768 = vld [vmem:[%s766] sm:%s759]
                %769 = vst [vmem:[%s767] sm:%s759] %v768
                %v770 = vld [vmem:[%s766 + $0x8] sm:%s759]
                %771 = vst [vmem:[%s767 + $0x8] sm:%s759] %v770
                %v772 = vld [vmem:[%s766 + $0x10] sm:%s759]
                %773 = vst [vmem:[%s767 + $0x10] sm:%s759] %v772
                %v774 = vld [vmem:[%s766 + $0x18] sm:%s759]
                %775 = vst [vmem:[%s767 + $0x18] sm:%s759] %v774
                %v776 = vld [vmem:[%s766 + $0x20] sm:%s759]
                %777 = vst [vmem:[%s767 + $0x80] sm:%s759] %v776
                %v778 = vld [vmem:[%s766 + $0x28] sm:%s759]
                %779 = vst [vmem:[%s767 + $0x88] sm:%s759] %v778
                %v780 = vld [vmem:[%s766 + $0x30] sm:%s759]
                %781 = vst [vmem:[%s767 + $0x90] sm:%s759] %v780
                %v782 = vld [vmem:[%s766 + $0x38] sm:%s759]
                %783 = vst [vmem:[%s767 + $0x98] sm:%s759] %v782
              $region61: #{tpu_custom_call.1} parent=55 // loop_footer
                %s765 = sadd.s32 1, %s761
              $region62: #{tpu_custom_call.1} parent=55 // loop_footer_branch
                %760 = sbr.rel target = $region58
              $region63: #{tpu_custom_call.1} parent=55 // loop_exit
                _
            $region56: #{tpu_custom_call.1} parent=47 // pred_fallthru
              _
          $region48: #{tpu_custom_call.1} parent=43 // pred_fallthru
            _
          %812 = vnop
        $region44: #{tpu_custom_call.1} parent=31 // pred_fallthru
          _
      $region32: #{tpu_custom_call.1} parent=5 // pred_fallthru
        _
      %p813 = scmp.le.s32.totalorder 2, %s12
      // Predicated region
      $region79: #{tpu_custom_call.1} parent=5 // pred_check
        %p814 = pneg %p813
      $region80: #{tpu_custom_call.1} parent=5 // pred_check_branch
        %816 = sbr.rel (%p814) target = $region82
      $region81: #{tpu_custom_call.1} parent=5 // pred_region
        %s817 = ssub.s32 %s12, 2
        // Predicated region
        $region83: #{tpu_custom_call.1} parent=81 // pred_check
          %p818 = pneg %p104
        $region84: #{tpu_custom_call.1} parent=81 // pred_check_branch
          %820 = sbr.rel (%p818) target = $region86
        $region85: #{tpu_custom_call.1} parent=81 // pred_region
          %s821 = smul.u32 4, %s18
          %p822 = scmp.lt.s32.totalorder %s821, 15
          %s823 = scalar_select %p822, %s821, 15
          %s824 = smul.addr %s823, 8
          %s825 = scalar_lea.vmem %s3, %s824
        $region86: #{tpu_custom_call.1} parent=81 // pred_fallthru
          _
        // Predicated region
        $region87: #{tpu_custom_call.1} parent=81 // pred_check
          %p826 = pneg %p130
        $region88: #{tpu_custom_call.1} parent=81 // pred_check_branch
          %828 = sbr.rel (%p826) target = $region90
        $region89: #{tpu_custom_call.1} parent=81 // pred_region
          %s829 = smul.u32 4, %s18
          %p830 = scmp.lt.s32.totalorder %s829, 15
          %s831 = scalar_select %p830, %s829, 15
          %s832 = smul.addr %s831, 8
          %s833 = scalar_lea.vmem %s4, %s832
        $region90: #{tpu_custom_call.1} parent=81 // pred_fallthru
          _
        // Predicated region
        $region91: #{tpu_custom_call.1} parent=81 // pred_check
          %p834 = pneg %p156
        $region92: #{tpu_custom_call.1} parent=81 // pred_check_branch
          %836 = sbr.rel (%p834) target = $region94
        $region93: #{tpu_custom_call.1} parent=81 // pred_region
          %s837 = sand.u32 %s141, 1
          %s838 = sand.u32 %s141, 1
          %s839 = smul.addr %s838, 64
          %s840 = scalar_lea.vmem [#allocation2], %s839
        $region94: #{tpu_custom_call.1} parent=81 // pred_fallthru
          _
      $region82: #{tpu_custom_call.1} parent=5 // pred_fallthru
        _
    $region6: #{tpu_custom_call.1} parent=1 // loop_footer
      %s16 = sadd.s32 1, %s12
    $region7: #{tpu_custom_call.1} parent=1 // loop_footer_branch
      %11 = sbr.rel target = $region3
    $region8: #{tpu_custom_call.1} parent=1 // loop_exit
      _

// kernel: tpu_custom_call.1
$region0: #{tpu_custom_call.1}
  #allocation0 [shape = 'u32[]', space=smem, size = 0x4, offset = 0x4, fixed_abs, tag = 'smem constant byte address 0x4 - core index']
  #allocation1 [shape = 'u32[72,128]{1,0:T(1,128)}', space=vmem, size = 0x9000, scoped, tag = 'internal scratch']
  %s0 = inlined_call_operand.vmem [shape: f32[128,32], index: 0, kind: input, shape index: {}]
  %s1 = inlined_call_operand.vmem [shape: f32[128,32], index: 1, kind: input, shape index: {}]
  %s2 = inlined_call_operand.vmem [shape: f32[1,128], index: 2, kind: input, shape index: {}]
  %s3 = inlined_call_operand.vmem [shape: f32[128,2], index: 3, kind: output, shape index: {0}]
  %s4 = inlined_call_operand.vmem [shape: s32[128,2], index: 4, kind: output, shape index: {1}]
  %s5 = inlined_call_operand.vmem [shape: f32[2,128,32], index: 5, kind: output, shape index: {2}]
  %6 = xla_tuple %s3, %s4, %s5
  %s7 = sld [smem:[#allocation0]]
  $region95: #{tpu_custom_call.1} parent=0
    _
  %s9 = ssub.s32 1, %s7
  %s10 = scalar_select 0, %s9, %s7
  $region1: #{tpu_custom_call.1} parent=0
    #allocation2 [shape = 'u8[65536]{0}', space=vmem, size = 0x10000, scoped, tag = 'output window, operand 2']
    loop: start=0, step=1, limit=6
    $region2: #{tpu_custom_call.1} parent=1 // loop_pre_header
      _
    $region3: #{tpu_custom_call.1} parent=1 // loop_header
      %s12 = sphi 0, %s16
      %p13 = scmp.ge.s32.totalorder %s12, 6
      %s20 = sphi 0, %s20
      %s22 = sphi 0, %s20
      %s23 = sphi 0, %s22
      %s37 = sphi 0, %s23
      %s41 = sphi 0, %s41
      %s43 = sphi 0, %s41
      %s44 = sphi 0, %s43
      %s58 = sphi 0, %s44
      %s62 = sphi 0, %s62
      %s64 = sphi 0, %s62
      %s65 = sphi 0, %s64
      %s79 = sphi 0, %s65
      %s85 = sphi 0, %s87
      %s88 = sphi 0, %s85
      %s89 = sphi 0, %s88
      %s105 = sphi 0, %s89
      %s111 = sphi 0, %s113
      %s114 = sphi 0, %s111
      %s115 = sphi 0, %s114
      %s131 = sphi 0, %s115
      %s137 = sphi 0, %s139
      %s140 = sphi 0, %s137
      %s141 = sphi 0, %s140
      %s157 = sphi 0, %s141
    $region4: #{tpu_custom_call.1} parent=1 // loop_header_branch
      %15 = sbr.rel (%p13) target = $region8
    $region5: #{tpu_custom_call.1} parent=1 // loop_body
      %s17 = ssub.s32 %s12, 1
      %s18 = ssub.s32 %s12, 2
      %s19 = sadd.s32 %s12, 1
      %s21 = sadd.s32 %s20, 1
      %p24 = scmp.eq.s32.totalorder %s12, 3
      %p25 = scmp.ne.s32.totalorder %s20, %s22
      %p26 = scmp.eq.s32.totalorder %s12, 0
      %p27 = por %p25, %p26
      %p28 = scmp.ne.s32.totalorder %s20, %s22
      %p29 = scmp.eq.s32.totalorder %s17, 3
      %p30 = por %p28, %p29
      %p31 = scmp.ne.s32.totalorder %s22, %s23
      %p32 = scmp.eq.s32.totalorder %s17, 0
      %p33 = por %p31, %p32
      %p34 = scmp.ne.s32.totalorder %s22, %s23
      %p35 = scmp.eq.s32.totalorder %s18, 3
      %p36 = por %p34, %p35
      %p38 = scmp.ne.s32.totalorder %s23, %s37
      %p39 = scmp.eq.s32.totalorder %s18, 0
      %p40 = por %p38, %p39
      %s42 = sadd.s32 %s41, 1
      %p45 = scmp.eq.s32.totalorder %s12, 3
      %p46 = scmp.ne.s32.totalorder %s41, %s43
      %p47 = scmp.eq.s32.totalorder %s12, 0
      %p48 = por %p46, %p47
      %p49 = scmp.ne.s32.totalorder %s41, %s43
      %p50 = scmp.eq.s32.totalorder %s17, 3
      %p51 = por %p49, %p50
      %p52 = scmp.ne.s32.totalorder %s43, %s44
      %p53 = scmp.eq.s32.totalorder %s17, 0
      %p54 = por %p52, %p53
      %p55 = scmp.ne.s32.totalorder %s43, %s44
      %p56 = scmp.eq.s32.totalorder %s18, 3
      %p57 = por %p55, %p56
      %p59 = scmp.ne.s32.totalorder %s44, %s58
      %p60 = scmp.eq.s32.totalorder %s18, 0
      %p61 = por %p59, %p60
      %s63 = sadd.s32 %s62, 1
      %p66 = scmp.eq.s32.totalorder %s12, 3
      %p67 = scmp.ne.s32.totalorder %s62, %s64
      %p68 = scmp.eq.s32.totalorder %s12, 0
      %p69 = por %p67, %p68
      %p70 = scmp.ne.s32.totalorder %s62, %s64
      %p71 = scmp.eq.s32.totalorder %s17, 3
      %p72 = por %p70, %p71
      %p73 = scmp.ne.s32.totalorder %s64, %s65
      %p74 = scmp.eq.s32.totalorder %s17, 0
      %p75 = por %p73, %p74
      %p76 = scmp.ne.s32.totalorder %s64, %s65
      %p77 = scmp.eq.s32.totalorder %s18, 3
      %p78 = por %p76, %p77
      %p80 = scmp.ne.s32.totalorder %s65, %s79
      %p81 = scmp.eq.s32.totalorder %s18, 0
      %p82 = por %p80, %p81
      %s83 = ssub.s32 %s12, %s19
      %p84 = scmp.eq.s32.totalorder %s83, 0
      %s86 = sadd.s32 %s85, 1
      %s87 = scalar_select %p84, %s85, %s86
      %p90 = pneg %p84
      %p91 = scmp.eq.s32.totalorder %s12, 3
      %p92 = por %p90, %p91
      %p93 = scmp.ne.s32.totalorder %s85, %s88
      %p94 = scmp.eq.s32.totalorder %s12, 0
      %p95 = por %p93, %p94
      %p96 = scmp.ne.s32.totalorder %s85, %s88
      %p97 = scmp.eq.s32.totalorder %s17, 3
      %p98 = por %p96, %p97
      %p99 = scmp.ne.s32.totalorder %s88, %s89
      %p100 = scmp.eq.s32.totalorder %s17, 0
      %p101 = por %p99, %p100
      %p102 = scmp.ne.s32.totalorder %s88, %s89
      %p103 = scmp.eq.s32.totalorder %s18, 3
      %p104 = por %p102, %p103
      %p106 = scmp.ne.s32.totalorder %s89, %s105
      %p107 = scmp.eq.s32.totalorder %s18, 0
      %p108 = por %p106, %p107
      %s109 = ssub.s32 %s12, %s19
      %p110 = scmp.eq.s32.totalorder %s109, 0
      %s112 = sadd.s32 %s111, 1
      %s113 = scalar_select %p110, %s111, %s112
      %p116 = pneg %p110
      %p117 = scmp.eq.s32.totalorder %s12, 3
      %p118 = por %p116, %p117
      %p119 = scmp.ne.s32.totalorder %s111, %s114
      %p120 = scmp.eq.s32.totalorder %s12, 0
      %p121 = por %p119, %p120
      %p122 = scmp.ne.s32.totalorder %s111, %s114
      %p123 = scmp.eq.s32.totalorder %s17, 3
      %p124 = por %p122, %p123
      %p125 = scmp.ne.s32.totalorder %s114, %s115
      %p126 = scmp.eq.s32.totalorder %s17, 0
      %p127 = por %p125, %p126
      %p128 = scmp.ne.s32.totalorder %s114, %s115
      %p129 = scmp.eq.s32.totalorder %s18, 3
      %p130 = por %p128, %p129
      %p132 = scmp.ne.s32.totalorder %s115, %s131
      %p133 = scmp.eq.s32.totalorder %s18, 0
      %p134 = por %p132, %p133
      %s135 = ssub.s32 %s12, %s19
      %p136 = scmp.eq.s32.totalorder %s135, 0
      %s138 = sadd.s32 %s137, 1
      %s139 = scalar_select %p136, %s137, %s138
      %p142 = pneg %p136
      %p143 = scmp.eq.s32.totalorder %s12, 3
      %p144 = por %p142, %p143
      %p145 = scmp.ne.s32.totalorder %s137, %s140
      %p146 = scmp.eq.s32.totalorder %s12, 0
      %p147 = por %p145, %p146
      %p148 = scmp.ne.s32.totalorder %s137, %s140
      %p149 = scmp.eq.s32.totalorder %s17, 3
      %p150 = por %p148, %p149
      %p151 = scmp.ne.s32.totalorder %s140, %s141
      %p152 = scmp.eq.s32.totalorder %s17, 0
      %p153 = por %p151, %p152
      %p154 = scmp.ne.s32.totalorder %s140, %s141
      %p155 = scmp.eq.s32.totalorder %s18, 3
      %p156 = por %p154, %p155
      %p158 = scmp.ne.s32.totalorder %s141, %s157
      %p159 = scmp.eq.s32.totalorder %s18, 0
      %p160 = por %p158, %p159
      %p161 = scmp.le.s32.totalorder 1, %s12
      %p162 = scmp.lt.s32.totalorder %s12, 5
      %p163 = pnand %p161, %p162
      %p164 = pneg %p163
      // Predicated region
      $region9: #{tpu_custom_call.1} parent=5 // pred_check
        _
      $region10: #{tpu_custom_call.1} parent=5 // pred_check_branch
        %166 = sbr.rel (%p163) target = $region12
      $region11: #{tpu_custom_call.1} parent=5 // pred_region
        %s167 = ssub.s32 %s12, 1
        // Predicated region
        $region13: #{tpu_custom_call.1} parent=11 // pred_check
          %p168 = pneg %p33
        $region14: #{tpu_custom_call.1} parent=11 // pred_check_branch
          %170 = sbr.rel (%p168) target = $region16
        $region15: #{tpu_custom_call.1} parent=11 // pred_region
          _
        $region16: #{tpu_custom_call.1} parent=11 // pred_fallthru
          _
        // Predicated region
        $region17: #{tpu_custom_call.1} parent=11 // pred_check
          %p171 = pneg %p54
        $region18: #{tpu_custom_call.1} parent=11 // pred_check_branch
          %173 = sbr.rel (%p171) target = $region20
        $region19: #{tpu_custom_call.1} parent=11 // pred_region
          _
        $region20: #{tpu_custom_call.1} parent=11 // pred_fallthru
          _
        // Predicated region
        $region21: #{tpu_custom_call.1} parent=11 // pred_check
          %p174 = pneg %p75
        $region22: #{tpu_custom_call.1} parent=11 // pred_check_branch
          %176 = sbr.rel (%p174) target = $region24
        $region23: #{tpu_custom_call.1} parent=11 // pred_region
          _
        $region24: #{tpu_custom_call.1} parent=11 // pred_fallthru
          _
      $region12: #{tpu_custom_call.1} parent=5 // pred_fallthru
        _
      %p177 = scmp.lt.s32.totalorder %s12, 4
      // Predicated region
      $region25: #{tpu_custom_call.1} parent=5 // pred_check
        %p178 = pneg %p177
      $region26: #{tpu_custom_call.1} parent=5 // pred_check_branch
        %180 = sbr.rel (%p178) target = $region28
      $region27: #{tpu_custom_call.1} parent=5 // pred_region
        _
      $region28: #{tpu_custom_call.1} parent=5 // pred_fallthru
        _
      %p181 = scmp.le.s32.totalorder 1, %s12
      %p182 = scmp.lt.s32.totalorder %s12, 5
      %p183 = pnand %p181, %p182
      %p184 = pneg %p183
      // Predicated region
      $region29: #{tpu_custom_call.1} parent=5 // pred_check
        _
      $region30: #{tpu_custom_call.1} parent=5 // pred_check_branch
        %186 = sbr.rel (%p183) target = $region32
      $region31: #{tpu_custom_call.1} parent=5 // pred_region
        %s187 = ssub.s32 %s12, 1
        %p188 = pneg %p33
        %p189 = pneg %p30
        %p190 = pneg %p54
        %p191 = pneg %p51
        %p192 = pneg %p75
        %p193 = pneg %p72
        %p194 = pneg %p101
        %p195 = pneg %p98
        %s196 = smul.u32 4, %s17
        %p197 = scmp.lt.s32.totalorder %s196, 15
        %s198 = scalar_select %p197, %s196, 15
        %s199 = smul.addr %s198, 8
        %s200 = scalar_lea.vmem %s3, %s199
        %p201 = pneg %p127
        %p202 = pneg %p124
        %s203 = smul.u32 4, %s17
        %p204 = scmp.lt.s32.totalorder %s203, 15
        %s205 = scalar_select %p204, %s203, 15
        %s206 = smul.addr %s205, 8
        %s207 = scalar_lea.vmem %s4, %s206
        %p208 = pneg %p153
        %p209 = pneg %p150
        %s210 = sand.u32 %s140, 1
        %s211 = sand.u32 %s140, 1
        %s212 = smul.addr %s211, 64
        %s213 = scalar_lea.vmem [#allocation2], %s212
        %s214 = smul.u32 4, %s17
        %p215 = scmp.lt.s32.totalorder %s214, 15
        %s216 = scalar_select %p215, %s214, 15
        %s217 = smul.addr %s216, 8
        %s218 = scalar_lea.vmem %s3, %s217
        %s219 = smul.u32 4, %s17
        %s220 = smul.u32 4, %s17
        %p221 = scmp.lt.s32.totalorder %s220, 15
        %s222 = scalar_select %p221, %s220, 15
        %s223 = smul.addr %s222, 8
        %s224 = scalar_lea.vmem %s4, %s223
        %s225 = smul.u32 4, %s17
        %s226 = smul.u32 4, %s17
        %s227 = smul.u32 %s17, 32
        %s228 = scalar_lea.vmem %s0, %s227
        %v229 = vld [vmem:[%s228] sm:$0xff]
        %v230 = vld [vmem:[%s228 + $0x8] sm:$0xff]
        %v231 = vld [vmem:[%s228 + $0x10] sm:$0xff]
        %v232 = vld [vmem:[%s228 + $0x18] sm:$0xff]
        %v233 = vld [vmem:[%s1] sm:$0xff]
        %v234 = vld [vmem:[%s1 + $0x8] sm:$0xff]
        %v235 = vld [vmem:[%s1 + $0x10] sm:$0xff]
        %v236 = vld [vmem:[%s1 + $0x18] sm:$0xff]
        %v237 = vld [vmem:[%s1 + $0x20] sm:$0xff]
        %v238 = vld [vmem:[%s1 + $0x28] sm:$0xff]
        %v239 = vld [vmem:[%s1 + $0x30] sm:$0xff]
        %v240 = vld [vmem:[%s1 + $0x38] sm:$0xff]
        %v241 = vld [vmem:[%s1 + $0x40] sm:$0xff]
        %v242 = vld [vmem:[%s1 + $0x48] sm:$0xff]
        %v243 = vld [vmem:[%s1 + $0x50] sm:$0xff]
        %v244 = vld [vmem:[%s1 + $0x58] sm:$0xff]
        %v245 = vld [vmem:[%s1 + $0x60] sm:$0xff]
        %v246 = vld [vmem:[%s1 + $0x68] sm:$0xff]
        %v247 = vld [vmem:[%s1 + $0x70] sm:$0xff]
        %v248 = vld [vmem:[%s1 + $0x78] sm:$0xff]
        %v249 = vld [vmem:[%s0] sm:$0xff]
        %v250 = vld [vmem:[%s0 + $0x8] sm:$0xff]
        %v251 = vld [vmem:[%s0 + $0x10] sm:$0xff]
        %v252 = vld [vmem:[%s0 + $0x18] sm:$0xff]
        %v253 = vld [vmem:[%s0 + $0x20] sm:$0xff]
        %v254 = vld [vmem:[%s0 + $0x28] sm:$0xff]
        %v255 = vld [vmem:[%s0 + $0x30] sm:$0xff]
        %v256 = vld [vmem:[%s0 + $0x38] sm:$0xff]
        %v257 = vld [vmem:[%s0 + $0x40] sm:$0xff]
        %v258 = vld [vmem:[%s0 + $0x48] sm:$0xff]
        %v259 = vld [vmem:[%s0 + $0x50] sm:$0xff]
        %v260 = vld [vmem:[%s0 + $0x58] sm:$0xff]
        %v261 = vld [vmem:[%s0 + $0x60] sm:$0xff]
        %v262 = vld [vmem:[%s0 + $0x68] sm:$0xff]
        %v263 = vld [vmem:[%s0 + $0x70] sm:$0xff]
        %v264 = vld [vmem:[%s0 + $0x78] sm:$0xff]
        %s265 = scalar_lea.vmem %s1, %s227
        %v266 = vld [vmem:[%s265] sm:$0xff]
        %v267 = vld [vmem:[%s265 + $0x8] sm:$0xff]
        %v268 = vld [vmem:[%s265 + $0x10] sm:$0xff]
        %v269 = vld [vmem:[%s265 + $0x18] sm:$0xff]
        %v270 = vld [vmem:[%s2] sm:$0x1]
        %v271 = vmul.f32 %v229, %v229
        %v272 = vmul.f32 %v230, %v230
        %v273 = vmul.f32 %v231, %v231
        %v274 = vmul.f32 %v232, %v232
        %vm275 = vcmask 261120
        %v276 = vsel %vm275, %v271, 0.0
        %277 = vadd.xlane.f32.xlu0 %v276
        %v278 = vpop.xlane.xlu0 %277
        %v279 = vsel %vm275, %v272, 0.0
        %280 = vadd.xlane.f32.xlu0 %v279
        %v281 = vpop.xlane.xlu0 %280
        %v282 = vsel %vm275, %v273, 0.0
        %283 = vadd.xlane.f32.xlu0 %v282
        %v284 = vpop.xlane.xlu0 %283
        %v285 = vsel %vm275, %v274, 0.0
        %286 = vadd.xlane.f32.xlu0 %v285
        %v287 = vpop.xlane.xlu0 %286
        %v289 = vsel %vm275, %v229, 0
        %v292 = vsel %vm275, %v230, 0
        %v295 = vsel %vm275, %v231, 0
        %v298 = vsel %vm275, %v232, 0
        %v301 = vsel %vm275, %v233, 0
        %v304 = vsel %vm275, %v234, 0
        %v307 = vsel %vm275, %v235, 0
        %v310 = vsel %vm275, %v236, 0
        %v313 = vsel %vm275, %v237, 0
        %v316 = vsel %vm275, %v238, 0
        %v319 = vsel %vm275, %v239, 0
        %v322 = vsel %vm275, %v240, 0
        %v325 = vsel %vm275, %v241, 0
        %v328 = vsel %vm275, %v242, 0
        %v331 = vsel %vm275, %v243, 0
        %v334 = vsel %vm275, %v244, 0
        %v337 = vsel %vm275, %v245, 0
        %v340 = vsel %vm275, %v246, 0
        %v343 = vsel %vm275, %v247, 0
        %v346 = vsel %vm275, %v248, 0
        %348 = vmatpush.xpose.msra.mxu0 %v346
        %349 = vmatpush.xpose.msra.mxu0 %v343
        %350 = vmatpush.xpose.msra.mxu0 %v340
        %351 = vmatpush.xpose.msra.mxu0 %v337
        %352 = vmatpush.xpose.msra.mxu0 %v334
        %353 = vmatpush.xpose.msra.mxu0 %v331
        %354 = vmatpush.xpose.msra.mxu0 %v328
        %355 = vmatpush.xpose.msra.mxu0 %v325
        %356 = vmatpush.xpose.msra.mxu0 %v322
        %357 = vmatpush.xpose.msra.mxu0 %v319
        %358 = vmatpush.xpose.msra.mxu0 %v316
        %359 = vmatpush.xpose.msra.mxu0 %v313
        %360 = vmatpush.xpose.msra.mxu0 %v310
        %361 = vmatpush.xpose.msra.mxu0 %v307
        %362 = vmatpush.xpose.msra.mxu0 %v304
        %363 = vmatpush.xpose.msra.mxu0 %v301
        %364 = vmatmul.f32.gmra.mxu0 %v289
        %v365 = vpop.f32.mrf.mxu0
        %v366 = vadd.f32 0.0, %v365
        %367 = vmatmul.f32.gmra.mxu0 %v292
        %v368 = vpop.f32.mrf.mxu0
        %v369 = vadd.f32 0.0, %v368
        %370 = vmatmul.f32.gmra.mxu0 %v295
        %v371 = vpop.f32.mrf.mxu0
        %v372 = vadd.f32 0.0, %v371
        %373 = vmatmul.f32.gmra.mxu0 %v298
        %v374 = vpop.f32.mrf.mxu0
        %v375 = vadd.f32 0.0, %v374
        %376 = vdwg.mxu0
        %v378 = vperm.slane %v270, 0
        %v380 = vadd.f32 %v278, %v378
        %v381 = vadd.f32 %v281, %v378
        %v382 = vadd.f32 %v284, %v378
        %v383 = vadd.f32 %v287, %v378
        %v384 = vmul.f32 %v366, 2.0
        %v385 = vmul.f32 %v369, 2.0
        %v386 = vmul.f32 %v372, 2.0
        %v387 = vmul.f32 %v375, 2.0
        %v388 = vsub.f32 %v380, %v384
        %v389 = vsub.f32 %v381, %v385
        %v390 = vsub.f32 %v382, %v386
        %v391 = vsub.f32 %v383, %v387
        %v392 = vlaneseq
        %v393 = vand.u32 %v392, 127
        %vm394 = vcmp.lt.s32.totalorder %v393, 120
        %v395 = vsel %vm394, 1, 0
        %vm396 = vcmp.eq.s32.totalorder %v395, 1
        %v397 = vsel %vm396, %v388, inf
        %v398 = vsel %vm396, %v389, inf
        %v399 = vsel %vm396, %v390, inf
        %v400 = vsel %vm396, %v391, inf
        %401 = vmin.xlane.f32.xlu0 %v397
        %v402 = vpop.xlane.xlu0 %401
        %403 = vmin.xlane.f32.xlu0 %v398
        %v404 = vpop.xlane.xlu0 %403
        %405 = vmin.xlane.f32.xlu0 %v399
        %v406 = vpop.xlane.xlu0 %405
        %407 = vmin.xlane.f32.xlu0 %v400
        %v408 = vpop.xlane.xlu0 %407
        %vm409 = vcmp.eq.f32.partialorder %v397, %v402
        %vm410 = vcmp.eq.f32.partialorder %v398, %v404
        %vm411 = vcmp.eq.f32.partialorder %v399, %v406
        %vm412 = vcmp.eq.f32.partialorder %v400, %v408
        %v413 = vsel %vm409, %v393, 128
        %v414 = vsel %vm410, %v393, 128
        %v415 = vsel %vm411, %v393, 128
        %v416 = vsel %vm412, %v393, 128
        %v417 = vand.u32 %v413, 65535
        %v418 = vshra.s32 %v413, 16
        %v419 = vcvt.s32.f32 %v417
        %v420 = vcvt.s32.f32 %v418
        %421 = vmin.xlane.f32.xlu0 %v420
        %v422 = vpop.xlane.xlu0 %421
        %vm423 = vcmp.eq.f32.partialorder %v420, %v422
        %v424 = vsel %vm423, %v419, inf
        %425 = vmin.xlane.f32.xlu0 %v424
        %v426 = vpop.xlane.xlu0 %425
        %v427 = vcvt.f32.s32 %v426
        %v428 = vcvt.f32.s32 %v422
        %v429 = vshll.u32 %v428, 16
        %v430 = vadd.s32 %v429, %v427
        %v431 = vand.u32 %v414, 65535
        %v432 = vshra.s32 %v414, 16
        %v433 = vcvt.s32.f32 %v431
        %v434 = vcvt.s32.f32 %v432
        %435 = vmin.xlane.f32.xlu0 %v434
        %v436 = vpop.xlane.xlu0 %435
        %vm437 = vcmp.eq.f32.partialorder %v434, %v436
        %v438 = vsel %vm437, %v433, inf
        %439 = vmin.xlane.f32.xlu0 %v438
        %v440 = vpop.xlane.xlu0 %439
        %v441 = vcvt.f32.s32 %v440
        %v442 = vcvt.f32.s32 %v436
        %v443 = vshll.u32 %v442, 16
        %v444 = vadd.s32 %v443, %v441
        %v445 = vand.u32 %v415, 65535
        %v446 = vshra.s32 %v415, 16
        %v447 = vcvt.s32.f32 %v445
        %v448 = vcvt.s32.f32 %v446
        %449 = vmin.xlane.f32.xlu0 %v448
        %v450 = vpop.xlane.xlu0 %449
        %vm451 = vcmp.eq.f32.partialorder %v448, %v450
        %v452 = vsel %vm451, %v447, inf
        %453 = vmin.xlane.f32.xlu0 %v452
        %v454 = vpop.xlane.xlu0 %453
        %v455 = vcvt.f32.s32 %v454
        %v456 = vcvt.f32.s32 %v450
        %v457 = vshll.u32 %v456, 16
        %v458 = vadd.s32 %v457, %v455
        %v459 = vand.u32 %v416, 65535
        %v460 = vshra.s32 %v416, 16
        %v461 = vcvt.s32.f32 %v459
        %v462 = vcvt.s32.f32 %v460
        %463 = vmin.xlane.f32.xlu0 %v462
        %v464 = vpop.xlane.xlu0 %463
        %vm465 = vcmp.eq.f32.partialorder %v462, %v464
        %v466 = vsel %vm465, %v461, inf
        %467 = vmin.xlane.f32.xlu0 %v466
        %v468 = vpop.xlane.xlu0 %467
        %v469 = vcvt.f32.s32 %v468
        %v470 = vcvt.f32.s32 %v464
        %v471 = vshll.u32 %v470, 16
        %v472 = vadd.s32 %v471, %v469
        %vm473 = vcmp.eq.s32.totalorder %v393, %v430
        %vm474 = vcmp.eq.s32.totalorder %v393, %v444
        %vm475 = vcmp.eq.s32.totalorder %v393, %v458
        %vm476 = vcmp.eq.s32.totalorder %v393, %v472
        %v477 = vsel %vm473, inf, %v397
        %v478 = vsel %vm474, inf, %v398
        %v479 = vsel %vm475, inf, %v399
        %v480 = vsel %vm476, inf, %v400
        %481 = vmin.xlane.f32.xlu0 %v477
        %v482 = vpop.xlane.xlu0 %481
        %483 = vmin.xlane.f32.xlu0 %v478
        %v484 = vpop.xlane.xlu0 %483
        %485 = vmin.xlane.f32.xlu0 %v479
        %v486 = vpop.xlane.xlu0 %485
        %487 = vmin.xlane.f32.xlu0 %v480
        %v488 = vpop.xlane.xlu0 %487
        %vm489 = vcmp.eq.f32.partialorder %v477, %v482
        %vm490 = vcmp.eq.f32.partialorder %v478, %v484
        %vm491 = vcmp.eq.f32.partialorder %v479, %v486
        %vm492 = vcmp.eq.f32.partialorder %v480, %v488
        %v493 = vsel %vm489, %v393, 128
        %v494 = vsel %vm490, %v393, 128
        %v495 = vsel %vm491, %v393, 128
        %v496 = vsel %vm492, %v393, 128
        %v497 = vand.u32 %v493, 65535
        %v498 = vshra.s32 %v493, 16
        %v499 = vcvt.s32.f32 %v497
        %v500 = vcvt.s32.f32 %v498
        %501 = vmin.xlane.f32.xlu0 %v500
        %v502 = vpop.xlane.xlu0 %501
        %vm503 = vcmp.eq.f32.partialorder %v500, %v502
        %v504 = vsel %vm503, %v499, inf
        %505 = vmin.xlane.f32.xlu0 %v504
        %v506 = vpop.xlane.xlu0 %505
        %v507 = vcvt.f32.s32 %v506
        %v508 = vcvt.f32.s32 %v502
        %v509 = vshll.u32 %v508, 16
        %v510 = vadd.s32 %v509, %v507
        %v511 = vand.u32 %v494, 65535
        %v512 = vshra.s32 %v494, 16
        %v513 = vcvt.s32.f32 %v511
        %v514 = vcvt.s32.f32 %v512
        %515 = vmin.xlane.f32.xlu0 %v514
        %v516 = vpop.xlane.xlu0 %515
        %vm517 = vcmp.eq.f32.partialorder %v514, %v516
        %v518 = vsel %vm517, %v513, inf
        %519 = vmin.xlane.f32.xlu0 %v518
        %v520 = vpop.xlane.xlu0 %519
        %v521 = vcvt.f32.s32 %v520
        %v522 = vcvt.f32.s32 %v516
        %v523 = vshll.u32 %v522, 16
        %v524 = vadd.s32 %v523, %v521
        %v525 = vand.u32 %v495, 65535
        %v526 = vshra.s32 %v495, 16
        %v527 = vcvt.s32.f32 %v525
        %v528 = vcvt.s32.f32 %v526
        %529 = vmin.xlane.f32.xlu0 %v528
        %v530 = vpop.xlane.xlu0 %529
        %vm531 = vcmp.eq.f32.partialorder %v528, %v530
        %v532 = vsel %vm531, %v527, inf
        %533 = vmin.xlane.f32.xlu0 %v532
        %v534 = vpop.xlane.xlu0 %533
        %v535 = vcvt.f32.s32 %v534
        %v536 = vcvt.f32.s32 %v530
        %v537 = vshll.u32 %v536, 16
        %v538 = vadd.s32 %v537, %v535
        %v539 = vand.u32 %v496, 65535
        %v540 = vshra.s32 %v496, 16
        %v541 = vcvt.s32.f32 %v539
        %v542 = vcvt.s32.f32 %v540
        %543 = vmin.xlane.f32.xlu0 %v542
        %v544 = vpop.xlane.xlu0 %543
        %vm545 = vcmp.eq.f32.partialorder %v542, %v544
        %v546 = vsel %vm545, %v541, inf
        %547 = vmin.xlane.f32.xlu0 %v546
        %v548 = vpop.xlane.xlu0 %547
        %v549 = vcvt.f32.s32 %v548
        %v550 = vcvt.f32.s32 %v544
        %v551 = vshll.u32 %v550, 16
        %v552 = vadd.s32 %v551, %v549
        %vm553 = vcmp.eq.s32.totalorder %v393, %v510
        %vm554 = vcmp.eq.s32.totalorder %v393, %v524
        %vm555 = vcmp.eq.s32.totalorder %v393, %v538
        %vm556 = vcmp.eq.s32.totalorder %v393, %v552
        %v557 = vsel %vm473, 1, 0
        %v558 = vsel %vm474, 1, 0
        %v559 = vsel %vm475, 1, 0
        %v560 = vsel %vm476, 1, 0
        %v561 = vsel %vm553, 1, 0
        %v562 = vsel %vm554, 1, 0
        %v563 = vsel %vm555, 1, 0
        %v564 = vsel %vm556, 1, 0
        %v565 = vcvt.s32.f32 %v557
        %v566 = vcvt.s32.f32 %v558
        %v567 = vcvt.s32.f32 %v559
        %v568 = vcvt.s32.f32 %v560
        %v569 = vcvt.s32.f32 %v561
        %v570 = vcvt.s32.f32 %v562
        %v571 = vcvt.s32.f32 %v563
        %v572 = vcvt.s32.f32 %v564
        %573 = vmatpush.msra.mxu0 %v264
        %574 = vmatpush.msra.mxu0 %v263
        %575 = vmatpush.msra.mxu0 %v262
        %576 = vmatpush.msra.mxu0 %v261
        %577 = vmatpush.msra.mxu0 %v260
        %578 = vmatpush.msra.mxu0 %v259
        %579 = vmatpush.msra.mxu0 %v258
        %580 = vmatpush.msra.mxu0 %v257
        %581 = vmatpush.msra.mxu0 %v256
        %582 = vmatpush.msra.mxu0 %v255
        %583 = vmatpush.msra.mxu0 %v254
        %584 = vmatpush.msra.mxu0 %v253
        %585 = vmatpush.msra.mxu0 %v252
        %586 = vmatpush.msra.mxu0 %v251
        %587 = vmatpush.msra.mxu0 %v250
        %588 = vmatpush.msra.mxu0 %v249
        %589 = vmatmul.f32.gmra.mxu0 %v565
        %v590 = vpop.f32.mrf.mxu0
        %v591 = vadd.f32 0.0, %v590
        %592 = vmatmul.f32.gmra.mxu0 %v566
        %v593 = vpop.f32.mrf.mxu0
        %v594 = vadd.f32 0.0, %v593
        %595 = vmatmul.f32.gmra.mxu0 %v567
        %v596 = vpop.f32.mrf.mxu0
        %v597 = vadd.f32 0.0, %v596
        %598 = vmatmul.f32.gmra.mxu0 %v568
        %v599 = vpop.f32.mrf.mxu0
        %v600 = vadd.f32 0.0, %v599
        %601 = vmatmul.f32.gmra.mxu0 %v569
        %v602 = vpop.f32.mrf.mxu0
        %v603 = vadd.f32 0.0, %v602
        %604 = vmatmul.f32.gmra.mxu0 %v570
        %v605 = vpop.f32.mrf.mxu0
        %v606 = vadd.f32 0.0, %v605
        %607 = vmatmul.f32.gmra.mxu0 %v571
        %v608 = vpop.f32.mrf.mxu0
        %v609 = vadd.f32 0.0, %v608
        %610 = vmatmul.f32.gmra.mxu0 %v572
        %v611 = vpop.f32.mrf.mxu0
        %v612 = vadd.f32 0.0, %v611
        %613 = vdwg.mxu0
        %v614 = vsub.f32 %v266, %v591
        %v615 = vsub.f32 %v267, %v594
        %v616 = vsub.f32 %v268, %v597
        %v617 = vsub.f32 %v269, %v600
        %618 = vst.msk [vmem:[%s213] sm:$0xff] %vm275, %v614
        %619 = vst.msk [vmem:[%s213 + $0x8] sm:$0xff] %vm275, %v615
        %620 = vst.msk [vmem:[%s213 + $0x10] sm:$0xff] %vm275, %v616
        %621 = vst.msk [vmem:[%s213 + $0x18] sm:$0xff] %vm275, %v617
        %v622 = vsub.f32 %v266, %v603
        %v623 = vsub.f32 %v267, %v606
        %v624 = vsub.f32 %v268, %v609
        %v625 = vsub.f32 %v269, %v612
        %s626 = scalar_lea.vmem %s213, 32 [#allocation2]
        %627 = vst.msk [vmem:[%s626] sm:$0xff] %vm275, %v622
        %628 = vst.msk [vmem:[%s626 + $0x8] sm:$0xff] %vm275, %v623
        %629 = vst.msk [vmem:[%s626 + $0x10] sm:$0xff] %vm275, %v624
        %630 = vst.msk [vmem:[%s626 + $0x18] sm:$0xff] %vm275, %v625
        %vm631 = vcmask 7168
        %v632 = vsel %vm631, %v402, %v482
        %v633 = vsel %vm631, %v404, %v484
        %v634 = vsel %vm631, %v406, %v486
        %v635 = vsel %vm631, %v408, %v488
        %v636 = vmax.f32 %v632, 0.0
        %v637 = vmax.f32 %v633, 0.0
        %v638 = vmax.f32 %v634, 0.0
        %v639 = vmax.f32 %v635, 0.0
        %v640 = vrsqrt.pop %v636
        %v641 = vmul.f32 %v640, %v636
        %v642 = vmul.f32 %v641, %v640
        %v643 = vmul.f32 0.5, %v642
        %v644 = vsub.f32 1.5, %v643
        %v645 = vmul.f32 %v640, %v644
        %v646 = vmul.f32 %v636, %v645
        %vm647 = vcmp.eq.f32.partialorder %v636, inf
        %v648 = vsel %vm647, %v636, %v646
        %vm649 = vcmp.eq.f32.partialorder %v636, 0.0
        %v650 = vand.u32 %v636, 2147483648
        %v651 = vsel %vm649, %v650, %v648
        %v652 = vrsqrt.pop %v637
        %v653 = vmul.f32 %v652, %v637
        %v654 = vmul.f32 %v653, %v652
        %v655 = vmul.f32 0.5, %v654
        %v656 = vsub.f32 1.5, %v655
        %v657 = vmul.f32 %v652, %v656
        %v658 = vmul.f32 %v637, %v657
        %vm659 = vcmp.eq.f32.partialorder %v637, inf
        %v660 = vsel %vm659, %v637, %v658
        %vm661 = vcmp.eq.f32.partialorder %v637, 0.0
        %v662 = vand.u32 %v637, 2147483648
        %v663 = vsel %vm661, %v662, %v660
        %v664 = vrsqrt.pop %v638
        %v665 = vmul.f32 %v664, %v638
        %v666 = vmul.f32 %v665, %v664
        %v667 = vmul.f32 0.5, %v666
        %v668 = vsub.f32 1.5, %v667
        %v669 = vmul.f32 %v664, %v668
        %v670 = vmul.f32 %v638, %v669
        %vm671 = vcmp.eq.f32.partialorder %v638, inf
        %v672 = vsel %vm671, %v638, %v670
        %vm673 = vcmp.eq.f32.partialorder %v638, 0.0
        %v674 = vand.u32 %v638, 2147483648
        %v675 = vsel %vm673, %v674, %v672
        %v676 = vrsqrt.pop %v639
        %v677 = vmul.f32 %v676, %v639
        %v678 = vmul.f32 %v677, %v676
        %v679 = vmul.f32 0.5, %v678
        %v680 = vsub.f32 1.5, %v679
        %v681 = vmul.f32 %v676, %v680
        %v682 = vmul.f32 %v639, %v681
        %vm683 = vcmp.eq.f32.partialorder %v639, inf
        %v684 = vsel %vm683, %v639, %v682
        %vm685 = vcmp.eq.f32.partialorder %v639, 0.0
        %v686 = vand.u32 %v639, 2147483648
        %v687 = vsel %vm685, %v686, %v684
        %v688 = vsub.f32 0.0, %v651
        %v689 = vsub.f32 0.0, %v663
        %v690 = vsub.f32 0.0, %v675
        %v691 = vsub.f32 0.0, %v687
        %v692 = vrcp.pop 10.0
        %v693 = vmul.f32 10.0, %v692
        %v694 = vsub.f32 1.0, %v693
        %v695 = vmul.f32 %v692, %v694
        %v696 = vadd.f32 %v692, %v695
        %vm697 = vweird.f32 %v692
        %v698 = vsel %vm697, %v692, %v696
        %v699 = vmul.f32 %v688, %v698
        %v700 = vmul.f32 %v689, %v698
        %v701 = vmul.f32 %v690, %v698
        %v702 = vmul.f32 %v691, %v698
        %v703 = vmul.f32 %v699, 1.442695
        %v704 = vpow.pop %v703
        %v705 = vmul.f32 %v700, 1.442695
        %v706 = vpow.pop %v705
        %v707 = vmul.f32 %v701, 1.442695
        %v708 = vpow.pop %v707
        %v709 = vmul.f32 %v702, 1.442695
        %v710 = vpow.pop %v709
        %vm711 = vcmask 15360
        %712 = vst.msk [vmem:[%s218] sm:$0xff] %vm711, %v704
        %713 = vst.msk [vmem:[%s218 + $0x8] sm:$0xff] %vm711, %v706
        %714 = vst.msk [vmem:[%s218 + $0x10] sm:$0xff] %vm711, %v708
        %715 = vst.msk [vmem:[%s218 + $0x18] sm:$0xff] %vm711, %v710
        %v716 = vsel %vm631, %v430, %v510
        %v717 = vsel %vm631, %v444, %v524
        %v718 = vsel %vm631, %v458, %v538
        %v719 = vsel %vm631, %v472, %v552
        %720 = vst.msk [vmem:[%s224] sm:$0xff] %vm711, %v716
        %721 = vst.msk [vmem:[%s224 + $0x8] sm:$0xff] %vm711, %v717
        %722 = vst.msk [vmem:[%s224 + $0x10] sm:$0xff] %vm711, %v718
        %723 = vst.msk [vmem:[%s224 + $0x18] sm:$0xff] %vm711, %v719
        %s724 = smul.u32 4, %s17
        %p725 = scmp.lt.s32.totalorder %s724, 15
        %s726 = scalar_select %p725, %s724, 15
        %s727 = smul.addr %s726, 8
        %s728 = scalar_lea.vmem %s3, %s727
        %s729 = smul.u32 4, %s17
        %p730 = scmp.lt.s32.totalorder %s729, 15
        %s731 = scalar_select %p730, %s729, 15
        %s732 = smul.addr %s731, 8
        %s733 = scalar_lea.vmem %s4, %s732
        %s734 = sand.u32 %s140, 1
        %s735 = sand.u32 %s140, 1
        %s736 = smul.addr %s735, 64
        %s737 = scalar_lea.vmem [#allocation2], %s736
        // Predicated region
        $region33: #{tpu_custom_call.1} parent=31 // pred_check
          %p738 = pneg %p98
        $region34: #{tpu_custom_call.1} parent=31 // pred_check_branch
          %740 = sbr.rel (%p738) target = $region36
        $region35: #{tpu_custom_call.1} parent=31 // pred_region
          %s741 = smul.u32 4, %s17
        $region36: #{tpu_custom_call.1} parent=31 // pred_fallthru
          _
        // Predicated region
        $region37: #{tpu_custom_call.1} parent=31 // pred_check
          %p742 = pneg %p124
        $region38: #{tpu_custom_call.1} parent=31 // pred_check_branch
          %744 = sbr.rel (%p742) target = $region40
        $region39: #{tpu_custom_call.1} parent=31 // pred_region
          %s745 = smul.u32 4, %s17
        $region40: #{tpu_custom_call.1} parent=31 // pred_fallthru
          _
        // Predicated region
        $region41: #{tpu_custom_call.1} parent=31 // pred_check
          %p746 = pneg %p150
        $region42: #{tpu_custom_call.1} parent=31 // pred_check_branch
          %748 = sbr.rel (%p746) target = $region44
        $region43: #{tpu_custom_call.1} parent=31 // pred_region
          %s749 = smul.u32 4, %s17
          %s750 = smul.addr %s749, 8
          %s751 = scalar_lea.vmem %s5, %s750
          // Predicated region
          $region45: #{tpu_custom_call.1} parent=43 // pred_check
            _
          $region46: #{tpu_custom_call.1} parent=43 // pred_check_branch
            %753 = sbr.rel (0) target = $region48
          $region47: #{tpu_custom_call.1} parent=43 // pred_region
            // Predicated region
            $region49: #{tpu_custom_call.1} parent=47 // pred_check
              _
            $region50: #{tpu_custom_call.1} parent=47 // pred_check_branch
              %755 = sbr.rel (0) target = $region52
            $region51: #{tpu_custom_call.1} parent=47 // pred_region
              // Predicated region
              $region64: #{tpu_custom_call.1} parent=51 // pred_check
                _
              $region65: #{tpu_custom_call.1} parent=51 // pred_check_branch
                %785 = sbr.rel (0) target = $region67
              $region66: #{tpu_custom_call.1} parent=51 // pred_region
                loop: start=0, step=1, limit=1
                $region68: #{tpu_custom_call.1} parent=66 // loop_pre_header
                  _
                $region69: #{tpu_custom_call.1} parent=66 // loop_header
                  %s787 = sphi 0, %s791
                  %p788 = scmp.ge.s32.totalorder %s787, 1
                  %s792 = sphi %s737, %s737
                  %s793 = sphi %s751, %s751
                $region70: #{tpu_custom_call.1} parent=66 // loop_header_branch
                  %790 = sbr.rel (%p788) target = $region74
                $region71: #{tpu_custom_call.1} parent=66 // loop_body
                  %v794 = vld [vmem:[%s792] sm:$0xff]
                  %795 = vst [vmem:[%s793] sm:$0xff] %v794
                  %v796 = vld [vmem:[%s792 + $0x8] sm:$0xff]
                  %797 = vst [vmem:[%s793 + $0x8] sm:$0xff] %v796
                  %v798 = vld [vmem:[%s792 + $0x10] sm:$0xff]
                  %799 = vst [vmem:[%s793 + $0x10] sm:$0xff] %v798
                  %v800 = vld [vmem:[%s792 + $0x18] sm:$0xff]
                  %801 = vst [vmem:[%s793 + $0x18] sm:$0xff] %v800
                  %v802 = vld [vmem:[%s792 + $0x20] sm:$0xff]
                  %803 = vst [vmem:[%s793 + $0x80] sm:$0xff] %v802
                  %v804 = vld [vmem:[%s792 + $0x28] sm:$0xff]
                  %805 = vst [vmem:[%s793 + $0x88] sm:$0xff] %v804
                  %v806 = vld [vmem:[%s792 + $0x30] sm:$0xff]
                  %807 = vst [vmem:[%s793 + $0x90] sm:$0xff] %v806
                  %v808 = vld [vmem:[%s792 + $0x38] sm:$0xff]
                  %809 = vst [vmem:[%s793 + $0x98] sm:$0xff] %v808
                $region72: #{tpu_custom_call.1} parent=66 // loop_footer
                  %s791 = sadd.s32 1, %s787
                $region73: #{tpu_custom_call.1} parent=66 // loop_footer_branch
                  %786 = sbr.rel target = $region69
                $region74: #{tpu_custom_call.1} parent=66 // loop_exit
                  _
              $region67: #{tpu_custom_call.1} parent=51 // pred_fallthru
                _
              // Predicated region
              $region75: #{tpu_custom_call.1} parent=51 // pred_check
                _
              $region76: #{tpu_custom_call.1} parent=51 // pred_check_branch
                %811 = sbr.rel target = $region78
              $region77: #{tpu_custom_call.1} parent=51 // pred_region
                _
              $region78: #{tpu_custom_call.1} parent=51 // pred_fallthru
                _
            $region52: #{tpu_custom_call.1} parent=47 // pred_fallthru
              _
            // Predicated region
            $region53: #{tpu_custom_call.1} parent=47 // pred_check
              _
            $region54: #{tpu_custom_call.1} parent=47 // pred_check_branch
              %757 = sbr.rel target = $region56
            $region55: #{tpu_custom_call.1} parent=47 // pred_region
              %s759 = ssub.s32 256, 1
              loop: start=0, step=1, limit=1
              $region57: #{tpu_custom_call.1} parent=55 // loop_pre_header
                _
              $region58: #{tpu_custom_call.1} parent=55 // loop_header
                %s761 = sphi 0, %s765
                %p762 = scmp.ge.s32.totalorder %s761, 1
                %s766 = sphi %s737, %s737
                %s767 = sphi %s751, %s751
              $region59: #{tpu_custom_call.1} parent=55 // loop_header_branch
                %764 = sbr.rel (%p762) target = $region63
              $region60: #{tpu_custom_call.1} parent=55 // loop_body
                %v768 = vld [vmem:[%s766] sm:%s759]
                %769 = vst [vmem:[%s767] sm:%s759] %v768
                %v770 = vld [vmem:[%s766 + $0x8] sm:%s759]
                %771 = vst [vmem:[%s767 + $0x8] sm:%s759] %v770
                %v772 = vld [vmem:[%s766 + $0x10] sm:%s759]
                %773 = vst [vmem:[%s767 + $0x10] sm:%s759] %v772
                %v774 = vld [vmem:[%s766 + $0x18] sm:%s759]
                %775 = vst [vmem:[%s767 + $0x18] sm:%s759] %v774
                %v776 = vld [vmem:[%s766 + $0x20] sm:%s759]
                %777 = vst [vmem:[%s767 + $0x80] sm:%s759] %v776
                %v778 = vld [vmem:[%s766 + $0x28] sm:%s759]
                %779 = vst [vmem:[%s767 + $0x88] sm:%s759] %v778
                %v780 = vld [vmem:[%s766 + $0x30] sm:%s759]
                %781 = vst [vmem:[%s767 + $0x90] sm:%s759] %v780
                %v782 = vld [vmem:[%s766 + $0x38] sm:%s759]
                %783 = vst [vmem:[%s767 + $0x98] sm:%s759] %v782
              $region61: #{tpu_custom_call.1} parent=55 // loop_footer
                %s765 = sadd.s32 1, %s761
              $region62: #{tpu_custom_call.1} parent=55 // loop_footer_branch
                %760 = sbr.rel target = $region58
              $region63: #{tpu_custom_call.1} parent=55 // loop_exit
                _
            $region56: #{tpu_custom_call.1} parent=47 // pred_fallthru
              _
          $region48: #{tpu_custom_call.1} parent=43 // pred_fallthru
            _
          %812 = vnop
        $region44: #{tpu_custom_call.1} parent=31 // pred_fallthru
          _
      $region32: #{tpu_custom_call.1} parent=5 // pred_fallthru
        _
      %p813 = scmp.le.s32.totalorder 2, %s12
      // Predicated region
      $region79: #{tpu_custom_call.1} parent=5 // pred_check
        %p814 = pneg %p813
      $region80: #{tpu_custom_call.1} parent=5 // pred_check_branch
        %816 = sbr.rel (%p814) target = $region82
      $region81: #{tpu_custom_call.1} parent=5 // pred_region
        %s817 = ssub.s32 %s12, 2
        // Predicated region
        $region83: #{tpu_custom_call.1} parent=81 // pred_check
          %p818 = pneg %p104
        $region84: #{tpu_custom_call.1} parent=81 // pred_check_branch
          %820 = sbr.rel (%p818) target = $region86
        $region85: #{tpu_custom_call.1} parent=81 // pred_region
          %s821 = smul.u32 4, %s18
          %p822 = scmp.lt.s32.totalorder %s821, 15
          %s823 = scalar_select %p822, %s821, 15
          %s824 = smul.addr %s823, 8
          %s825 = scalar_lea.vmem %s3, %s824
        $region86: #{tpu_custom_call.1} parent=81 // pred_fallthru
          _
        // Predicated region
        $region87: #{tpu_custom_call.1} parent=81 // pred_check
          %p826 = pneg %p130
        $region88: #{tpu_custom_call.1} parent=81 // pred_check_branch
          %828 = sbr.rel (%p826) target = $region90
        $region89: #{tpu_custom_call.1} parent=81 // pred_region
          %s829 = smul.u32 4, %s18
          %p830 = scmp.lt.s32.totalorder %s829, 15
          %s831 = scalar_select %p830, %s829, 15
          %s832 = smul.addr %s831, 8
          %s833 = scalar_lea.vmem %s4, %s832
        $region90: #{tpu_custom_call.1} parent=81 // pred_fallthru
          _
        // Predicated region
        $region91: #{tpu_custom_call.1} parent=81 // pred_check
          %p834 = pneg %p156
        $region92: #{tpu_custom_call.1} parent=81 // pred_check_branch
          %836 = sbr.rel (%p834) target = $region94
        $region93: #{tpu_custom_call.1} parent=81 // pred_region
          %s837 = sand.u32 %s141, 1
          %s838 = sand.u32 %s141, 1
          %s839 = smul.addr %s838, 64
          %s840 = scalar_lea.vmem [#allocation2], %s839
        $region94: #{tpu_custom_call.1} parent=81 // pred_fallthru
          _
      $region82: #{tpu_custom_call.1} parent=5 // pred_fallthru
        _
    $region6: #{tpu_custom_call.1} parent=1 // loop_footer
      %s16 = sadd.s32 1, %s12
    $region7: #{tpu_custom_call.1} parent=1 // loop_footer_branch
      %11 = sbr.rel target = $region3
    $region8: #{tpu_custom_call.1} parent=1 // loop_exit
      _

</llo_original>
